<compile_context>
chip_gen: v7x
topology: tpu7x:2x2x1
jax: 0.10.0
libtpu: 0.0.40
codegen_flags: <defaults>
</compile_context>

<pallas_src>
import jax
import jax.numpy as jnp
from jax.experimental import pallas as pl
from jax.experimental.pallas import tpu as pltpu


def _make_gather_kernel(tb: int):
    """Builds a kernel that gathers `tb` (e1, r, e2) embedding rows per step."""

    def kernel(e1_ids_ref, r_ids_ref, e2_ids_ref,     # scalar-prefetch (SMEM)
               ent_hbm, rel_hbm,                      # HBM-resident tables (pl.ANY)
               e1_out, r_out, e2_out,                 # (tb, dim) VMEM output tiles
               e1_buf, r_buf, e2_buf, sems):          # VMEM scratch + DMA sems
        base = pl.multiple_of(pl.program_id(0) * tb, tb)

        # Issue all 3*tb single-row gather DMAs (HBM table row -> VMEM scratch
        # row).  Statically unrolled so the DMAs all overlap.
        for i in range(tb):
            row = base + i
            e1 = e1_ids_ref[row]
            r = r_ids_ref[row]
            e2 = e2_ids_ref[row]
            pltpu.make_async_copy(ent_hbm.at[pl.ds(e1, 1), :],
                                  e1_buf.at[pl.ds(i, 1), :],
                                  sems.at[0]).start()
            pltpu.make_async_copy(rel_hbm.at[pl.ds(r, 1), :],
                                  r_buf.at[pl.ds(i, 1), :],
                                  sems.at[1]).start()
            pltpu.make_async_copy(ent_hbm.at[pl.ds(e2, 1), :],
                                  e2_buf.at[pl.ds(i, 1), :],
                                  sems.at[2]).start()

        # Wait for all of them (each wait accounts for one row-sized copy on
        # the shared per-stream semaphore; all copies on a sem are equal size).
        for i in range(tb):
            pltpu.make_async_copy(ent_hbm.at[pl.ds(0, 1), :],
                                  e1_buf.at[pl.ds(i, 1), :],
                                  sems.at[0]).wait()
            pltpu.make_async_copy(rel_hbm.at[pl.ds(0, 1), :],
                                  r_buf.at[pl.ds(i, 1), :],
                                  sems.at[1]).wait()
            pltpu.make_async_copy(ent_hbm.at[pl.ds(0, 1), :],
                                  e2_buf.at[pl.ds(i, 1), :],
                                  sems.at[2]).wait()

        # One full (tb, dim) unmasked vector store per output tile.
        e1_out[...] = e1_buf[...]
        r_out[...] = r_buf[...]
        e2_out[...] = e2_buf[...]

    return kernel


def kg_embed_lookup(e1_ids, r_ids, e2_ids, entity_table, relation_table, *, tb=None):
    """Pallas equivalent of:
         e1_emb = entity_embeddings(e1_ids)
         r_emb  = relation_embeddings(r_ids)
         e2_emb = entity_embeddings(e2_ids)
    Tables stay in HBM; only the addressed rows are DMA'd.
    """
    batch = e1_ids.shape[0]
    num_ent, ent_dim = entity_table.shape
    num_rel, rel_dim = relation_table.shape

    if tb is None:
        tb = 8 if batch <= 128 else 128

    # Clamp ids so an out-of-range id can never address outside the tables
    # (HBM/VMEM refs are not bounds-checked at runtime).
    e1_ids = jnp.clip(e1_ids.astype(jnp.int32), 0, num_ent - 1)
    e2_ids = jnp.clip(e2_ids.astype(jnp.int32), 0, num_ent - 1)
    r_ids = jnp.clip(r_ids.astype(jnp.int32), 0, num_rel - 1)

    # Pad the batch up to a multiple of the row-block size (pad ids are 0,
    # which is in range; padded output rows are sliced off below).
    padded = pl.cdiv(batch, tb) * tb
    pad = padded - batch
    if pad:
        e1_ids = jnp.pad(e1_ids, (0, pad))
        r_ids = jnp.pad(r_ids, (0, pad))
        e2_ids = jnp.pad(e2_ids, (0, pad))

    grid = (padded // tb,)

    grid_spec = pltpu.PrefetchScalarGridSpec(
        num_scalar_prefetch=3,
        grid=grid,
        in_specs=[
            # Embedding tables stay in HBM; rows are gathered by manual DMA.
            pl.BlockSpec(memory_space=pl.ANY),
            pl.BlockSpec(memory_space=pl.ANY),
        ],
        out_specs=[
            pl.BlockSpec((tb, ent_dim), lambda b, e1, r, e2: (b, 0)),
            pl.BlockSpec((tb, rel_dim), lambda b, e1, r, e2: (b, 0)),
            pl.BlockSpec((tb, ent_dim), lambda b, e1, r, e2: (b, 0)),
        ],
        scratch_shapes=[
            pltpu.VMEM((tb, ent_dim), entity_table.dtype),
            pltpu.VMEM((tb, rel_dim), relation_table.dtype),
            pltpu.VMEM((tb, ent_dim), entity_table.dtype),
            pltpu.SemaphoreType.DMA((3,)),
        ],
    )

    out_shapes = (
        jax.ShapeDtypeStruct((padded, ent_dim), entity_table.dtype),
        jax.ShapeDtypeStruct((padded, rel_dim), relation_table.dtype),
        jax.ShapeDtypeStruct((padded, ent_dim), entity_table.dtype),
    )

    e1_emb, r_emb, e2_emb = pl.pallas_call(
        _make_gather_kernel(tb),
        grid_spec=grid_spec,
        out_shape=out_shapes,
        compiler_params=pltpu.CompilerParams(
            # No cross-iteration carry on the batch-block axis -> shard across
            # both TensorCores on v7x; harmless on single-TC v5e/v6e.
            dimension_semantics=("parallel",),
        ),
    )(e1_ids, r_ids, e2_ids, entity_table, relation_table)

    if pad:
        e1_emb = e1_emb[:batch]
        r_emb = r_emb[:batch]
        e2_emb = e2_emb[:batch]
    return e1_emb, r_emb, e2_emb


if __name__ == "__main__":
    # Small synthetic "knowledge graph": deterministic tables (nn.Embedding
    # default init ~ N(0, 1)) and a small batch of triple ids.  batch=10 is
    # deliberately not a multiple of 8 to exercise the padding path.
    num_entities = 32
    num_relations = 16
    entity_embedding_dim = 128
    relation_embedding_dim = 128
    batch = 10

    key = jax.random.PRNGKey(0)
    k_ent, k_rel, k_e1, k_r, k_e2 = jax.random.split(key, 5)

    entity_table = jax.random.normal(
        k_ent, (num_entities, entity_embedding_dim), dtype=jnp.float32)
    relation_table = jax.random.normal(
        k_rel, (num_relations, relation_embedding_dim), dtype=jnp.float32)

    e1_ids = jax.random.randint(k_e1, (batch,), 0, num_entities, dtype=jnp.int32)
    r_ids = jax.random.randint(k_r, (batch,), 0, num_relations, dtype=jnp.int32)
    e2_ids = jax.random.randint(k_e2, (batch,), 0, num_entities, dtype=jnp.int32)

    e1_emb, r_emb, e2_emb = kg_embed_lookup(
        e1_ids, r_ids, e2_ids, entity_table, relation_table)
    jax.block_until_ready((e1_emb, r_emb, e2_emb))

    # Reference check (pure-JAX embedding lookup).
    ref_e1 = jnp.take(entity_table, e1_ids, axis=0)
    ref_r = jnp.take(relation_table, r_ids, axis=0)
    ref_e2 = jnp.take(entity_table, e2_ids, axis=0)

    assert jnp.allclose(e1_emb, ref_e1)
    assert jnp.allclose(r_emb, ref_r)
    assert jnp.allclose(e2_emb, ref_e2)

    print("KERNEL_OK")
</pallas_src>

<mosaic_0001>
module attributes {stable_mosaic.version = 11 : i64} {
  func.func @kernel(%arg0: i32, %arg1: memref<16xi32, #tpu.memory_space<smem>>, %arg2: memref<16xi32, #tpu.memory_space<smem>>, %arg3: memref<16xi32, #tpu.memory_space<smem>>, %arg4: memref<32x128xf32, #tpu.memory_space<any>>, %arg5: memref<16x128xf32, #tpu.memory_space<any>>, %arg6: memref<8x128xf32, #tpu.memory_space<vmem>>, %arg7: memref<8x128xf32, #tpu.memory_space<vmem>>, %arg8: memref<8x128xf32, #tpu.memory_space<vmem>>, %arg9: memref<8x128xf32, #tpu.memory_space<vmem>>, %arg10: memref<8x128xf32, #tpu.memory_space<vmem>>, %arg11: memref<8x128xf32, #tpu.memory_space<vmem>>, %arg12: memref<3x!tpu.dma_semaphore, #tpu.memory_space<semaphore_mem>>) attributes {dimension_semantics = [#tpu.dimension_semantics<parallel>], iteration_bounds = array<i64: 2>, scalar_prefetch = 3 : i64, scratch_operands = 4 : i64, tpu.core_type = #tpu.core_type<tc>, window_params = [{}, {}, {transform_indices = @transform_2, window_bounds = array<i64: 8, 128>}, {transform_indices = @transform_3, window_bounds = array<i64: 8, 128>}, {transform_indices = @transform_4, window_bounds = array<i64: 8, 128>}]} {
    %c8_i32 = arith.constant 8 : i32
    %0 = arith.muli %arg0, %c8_i32 : i32
    %1 = tpu.assume_multiple %0, 8 : i32
    %c0_i32 = arith.constant 0 : i32
    %2 = arith.addi %1, %c0_i32 : i32
    %3 = arith.index_cast %2 : i32 to index
    %4 = memref.load %arg1[%3] : memref<16xi32, #tpu.memory_space<smem>>
    %5 = arith.index_cast %2 : i32 to index
    %6 = memref.load %arg2[%5] : memref<16xi32, #tpu.memory_space<smem>>
    %7 = arith.index_cast %2 : i32 to index
    %8 = memref.load %arg3[%7] : memref<16xi32, #tpu.memory_space<smem>>
    %c0_i32_0 = arith.constant 0 : i32
    %c0_i32_1 = arith.constant 0 : i32
    %9 = tpu.memref_slice %arg4[%4, %c0_i32_1] : memref<32x128xf32, #tpu.memory_space<any>> -> memref<1x128xf32, #tpu.memory_space<any>>
    %c0_i32_2 = arith.constant 0 : i32
    %c0_i32_3 = arith.constant 0 : i32
    %10 = tpu.memref_slice %arg9[%c0_i32_2, %c0_i32_3] : memref<8x128xf32, #tpu.memory_space<vmem>> -> memref<1x128xf32, #tpu.memory_space<vmem>>
    %11 = tpu.memref_slice %arg12[%c0_i32_0] : memref<3x!tpu.dma_semaphore, #tpu.memory_space<semaphore_mem>> -> memref<1x!tpu.dma_semaphore, #tpu.memory_space<semaphore_mem>>
    %12 = tpu.memref_squeeze %11 : memref<1x!tpu.dma_semaphore, #tpu.memory_space<semaphore_mem>> -> memref<!tpu.dma_semaphore, #tpu.memory_space<semaphore_mem>>
    tpu.enqueue_dma source(%9 : memref<1x128xf32, #tpu.memory_space<any>>) target(%10 : memref<1x128xf32, #tpu.memory_space<vmem>>) target_semaphore(%12 : memref<!tpu.dma_semaphore, #tpu.memory_space<semaphore_mem>>)
    %c1_i32 = arith.constant 1 : i32
    %c0_i32_4 = arith.constant 0 : i32
    %13 = tpu.memref_slice %arg5[%6, %c0_i32_4] : memref<16x128xf32, #tpu.memory_space<any>> -> memref<1x128xf32, #tpu.memory_space<any>>
    %c0_i32_5 = arith.constant 0 : i32
    %c0_i32_6 = arith.constant 0 : i32
    %14 = tpu.memref_slice %arg10[%c0_i32_5, %c0_i32_6] : memref<8x128xf32, #tpu.memory_space<vmem>> -> memref<1x128xf32, #tpu.memory_space<vmem>>
    %15 = tpu.memref_slice %arg12[%c1_i32] : memref<3x!tpu.dma_semaphore, #tpu.memory_space<semaphore_mem>> -> memref<1x!tpu.dma_semaphore, #tpu.memory_space<semaphore_mem>>
    %16 = tpu.memref_squeeze %15 : memref<1x!tpu.dma_semaphore, #tpu.memory_space<semaphore_mem>> -> memref<!tpu.dma_semaphore, #tpu.memory_space<semaphore_mem>>
    tpu.enqueue_dma source(%13 : memref<1x128xf32, #tpu.memory_space<any>>) target(%14 : memref<1x128xf32, #tpu.memory_space<vmem>>) target_semaphore(%16 : memref<!tpu.dma_semaphore, #tpu.memory_space<semaphore_mem>>)
    %c2_i32 = arith.constant 2 : i32
    %c0_i32_7 = arith.constant 0 : i32
    %17 = tpu.memref_slice %arg4[%8, %c0_i32_7] : memref<32x128xf32, #tpu.memory_space<any>> -> memref<1x128xf32, #tpu.memory_space<any>>
    %c0_i32_8 = arith.constant 0 : i32
    %c0_i32_9 = arith.constant 0 : i32
    %18 = tpu.memref_slice %arg11[%c0_i32_8, %c0_i32_9] : memref<8x128xf32, #tpu.memory_space<vmem>> -> memref<1x128xf32, #tpu.memory_space<vmem>>
    %19 = tpu.memref_slice %arg12[%c2_i32] : memref<3x!tpu.dma_semaphore, #tpu.memory_space<semaphore_mem>> -> memref<1x!tpu.dma_semaphore, #tpu.memory_space<semaphore_mem>>
    %20 = tpu.memref_squeeze %19 : memref<1x!tpu.dma_semaphore, #tpu.memory_space<semaphore_mem>> -> memref<!tpu.dma_semaphore, #tpu.memory_space<semaphore_mem>>
    tpu.enqueue_dma source(%17 : memref<1x128xf32, #tpu.memory_space<any>>) target(%18 : memref<1x128xf32, #tpu.memory_space<vmem>>) target_semaphore(%20 : memref<!tpu.dma_semaphore, #tpu.memory_space<semaphore_mem>>)
    %c1_i32_10 = arith.constant 1 : i32
    %21 = arith.addi %1, %c1_i32_10 : i32
    %22 = arith.index_cast %21 : i32 to index
    %23 = memref.load %arg1[%22] : memref<16xi32, #tpu.memory_space<smem>>
    %24 = arith.index_cast %21 : i32 to index
    %25 = memref.load %arg2[%24] : memref<16xi32, #tpu.memory_space<smem>>
    %26 = arith.index_cast %21 : i32 to index
    %27 = memref.load %arg3[%26] : memref<16xi32, #tpu.memory_space<smem>>
    %c0_i32_11 = arith.constant 0 : i32
    %c0_i32_12 = arith.constant 0 : i32
    %28 = tpu.memref_slice %arg4[%23, %c0_i32_12] : memref<32x128xf32, #tpu.memory_space<any>> -> memref<1x128xf32, #tpu.memory_space<any>>
    %c1_i32_13 = arith.constant 1 : i32
    %c0_i32_14 = arith.constant 0 : i32
    %29 = tpu.memref_slice %arg9[%c1_i32_13, %c0_i32_14] : memref<8x128xf32, #tpu.memory_space<vmem>> -> memref<1x128xf32, #tpu.memory_space<vmem>>
    %30 = tpu.memref_slice %arg12[%c0_i32_11] : memref<3x!tpu.dma_semaphore, #tpu.memory_space<semaphore_mem>> -> memref<1x!tpu.dma_semaphore, #tpu.memory_space<semaphore_mem>>
    %31 = tpu.memref_squeeze %30 : memref<1x!tpu.dma_semaphore, #tpu.memory_space<semaphore_mem>> -> memref<!tpu.dma_semaphore, #tpu.memory_space<semaphore_mem>>
    tpu.enqueue_dma source(%28 : memref<1x128xf32, #tpu.memory_space<any>>) target(%29 : memref<1x128xf32, #tpu.memory_space<vmem>>) target_semaphore(%31 : memref<!tpu.dma_semaphore, #tpu.memory_space<semaphore_mem>>)
    %c1_i32_15 = arith.constant 1 : i32
    %c0_i32_16 = arith.constant 0 : i32
    %32 = tpu.memref_slice %arg5[%25, %c0_i32_16] : memref<16x128xf32, #tpu.memory_space<any>> -> memref<1x128xf32, #tpu.memory_space<any>>
    %c1_i32_17 = arith.constant 1 : i32
    %c0_i32_18 = arith.constant 0 : i32
    %33 = tpu.memref_slice %arg10[%c1_i32_17, %c0_i32_18] : memref<8x128xf32, #tpu.memory_space<vmem>> -> memref<1x128xf32, #tpu.memory_space<vmem>>
    %34 = tpu.memref_slice %arg12[%c1_i32_15] : memref<3x!tpu.dma_semaphore, #tpu.memory_space<semaphore_mem>> -> memref<1x!tpu.dma_semaphore, #tpu.memory_space<semaphore_mem>>
    %35 = tpu.memref_squeeze %34 : memref<1x!tpu.dma_semaphore, #tpu.memory_space<semaphore_mem>> -> memref<!tpu.dma_semaphore, #tpu.memory_space<semaphore_mem>>
    tpu.enqueue_dma source(%32 : memref<1x128xf32, #tpu.memory_space<any>>) target(%33 : memref<1x128xf32, #tpu.memory_space<vmem>>) target_semaphore(%35 : memref<!tpu.dma_semaphore, #tpu.memory_space<semaphore_mem>>)
    %c2_i32_19 = arith.constant 2 : i32
    %c0_i32_20 = arith.constant 0 : i32
    %36 = tpu.memref_slice %arg4[%27, %c0_i32_20] : memref<32x128xf32, #tpu.memory_space<any>> -> memref<1x128xf32, #tpu.memory_space<any>>
    %c1_i32_21 = arith.constant 1 : i32
    %c0_i32_22 = arith.constant 0 : i32
    %37 = tpu.memref_slice %arg11[%c1_i32_21, %c0_i32_22] : memref<8x128xf32, #tpu.memory_space<vmem>> -> memref<1x128xf32, #tpu.memory_space<vmem>>
    %38 = tpu.memref_slice %arg12[%c2_i32_19] : memref<3x!tpu.dma_semaphore, #tpu.memory_space<semaphore_mem>> -> memref<1x!tpu.dma_semaphore, #tpu.memory_space<semaphore_mem>>
    %39 = tpu.memref_squeeze %38 : memref<1x!tpu.dma_semaphore, #tpu.memory_space<semaphore_mem>> -> memref<!tpu.dma_semaphore, #tpu.memory_space<semaphore_mem>>
    tpu.enqueue_dma source(%36 : memref<1x128xf32, #tpu.memory_space<any>>) target(%37 : memref<1x128xf32, #tpu.memory_space<vmem>>) target_semaphore(%39 : memref<!tpu.dma_semaphore, #tpu.memory_space<semaphore_mem>>)
    %c2_i32_23 = arith.constant 2 : i32
    %40 = arith.addi %1, %c2_i32_23 : i32
    %41 = arith.index_cast %40 : i32 to index
    %42 = memref.load %arg1[%41] : memref<16xi32, #tpu.memory_space<smem>>
    %43 = arith.index_cast %40 : i32 to index
    %44 = memref.load %arg2[%43] : memref<16xi32, #tpu.memory_space<smem>>
    %45 = arith.index_cast %40 : i32 to index
    %46 = memref.load %arg3[%45] : memref<16xi32, #tpu.memory_space<smem>>
    %c0_i32_24 = arith.constant 0 : i32
    %c0_i32_25 = arith.constant 0 : i32
    %47 = tpu.memref_slice %arg4[%42, %c0_i32_25] : memref<32x128xf32, #tpu.memory_space<any>> -> memref<1x128xf32, #tpu.memory_space<any>>
    %c2_i32_26 = arith.constant 2 : i32
    %c0_i32_27 = arith.constant 0 : i32
    %48 = tpu.memref_slice %arg9[%c2_i32_26, %c0_i32_27] : memref<8x128xf32, #tpu.memory_space<vmem>> -> memref<1x128xf32, #tpu.memory_space<vmem>>
    %49 = tpu.memref_slice %arg12[%c0_i32_24] : memref<3x!tpu.dma_semaphore, #tpu.memory_space<semaphore_mem>> -> memref<1x!tpu.dma_semaphore, #tpu.memory_space<semaphore_mem>>
    %50 = tpu.memref_squeeze %49 : memref<1x!tpu.dma_semaphore, #tpu.memory_space<semaphore_mem>> -> memref<!tpu.dma_semaphore, #tpu.memory_space<semaphore_mem>>
    tpu.enqueue_dma source(%47 : memref<1x128xf32, #tpu.memory_space<any>>) target(%48 : memref<1x128xf32, #tpu.memory_space<vmem>>) target_semaphore(%50 : memref<!tpu.dma_semaphore, #tpu.memory_space<semaphore_mem>>)
    %c1_i32_28 = arith.constant 1 : i32
    %c0_i32_29 = arith.constant 0 : i32
    %51 = tpu.memref_slice %arg5[%44, %c0_i32_29] : memref<16x128xf32, #tpu.memory_space<any>> -> memref<1x128xf32, #tpu.memory_space<any>>
    %c2_i32_30 = arith.constant 2 : i32
    %c0_i32_31 = arith.constant 0 : i32
    %52 = tpu.memref_slice %arg10[%c2_i32_30, %c0_i32_31] : memref<8x128xf32, #tpu.memory_space<vmem>> -> memref<1x128xf32, #tpu.memory_space<vmem>>
    %53 = tpu.memref_slice %arg12[%c1_i32_28] : memref<3x!tpu.dma_semaphore, #tpu.memory_space<semaphore_mem>> -> memref<1x!tpu.dma_semaphore, #tpu.memory_space<semaphore_mem>>
    %54 = tpu.memref_squeeze %53 : memref<1x!tpu.dma_semaphore, #tpu.memory_space<semaphore_mem>> -> memref<!tpu.dma_semaphore, #tpu.memory_space<semaphore_mem>>
    tpu.enqueue_dma source(%51 : memref<1x128xf32, #tpu.memory_space<any>>) target(%52 : memref<1x128xf32, #tpu.memory_space<vmem>>) target_semaphore(%54 : memref<!tpu.dma_semaphore, #tpu.memory_space<semaphore_mem>>)
    %c2_i32_32 = arith.constant 2 : i32
    %c0_i32_33 = arith.constant 0 : i32
    %55 = tpu.memref_slice %arg4[%46, %c0_i32_33] : memref<32x128xf32, #tpu.memory_space<any>> -> memref<1x128xf32, #tpu.memory_space<any>>
    %c2_i32_34 = arith.constant 2 : i32
    %c0_i32_35 = arith.constant 0 : i32
    %56 = tpu.memref_slice %arg11[%c2_i32_34, %c0_i32_35] : memref<8x128xf32, #tpu.memory_space<vmem>> -> memref<1x128xf32, #tpu.memory_space<vmem>>
    %57 = tpu.memref_slice %arg12[%c2_i32_32] : memref<3x!tpu.dma_semaphore, #tpu.memory_space<semaphore_mem>> -> memref<1x!tpu.dma_semaphore, #tpu.memory_space<semaphore_mem>>
    %58 = tpu.memref_squeeze %57 : memref<1x!tpu.dma_semaphore, #tpu.memory_space<semaphore_mem>> -> memref<!tpu.dma_semaphore, #tpu.memory_space<semaphore_mem>>
    tpu.enqueue_dma source(%55 : memref<1x128xf32, #tpu.memory_space<any>>) target(%56 : memref<1x128xf32, #tpu.memory_space<vmem>>) target_semaphore(%58 : memref<!tpu.dma_semaphore, #tpu.memory_space<semaphore_mem>>)
    %c3_i32 = arith.constant 3 : i32
    %59 = arith.addi %1, %c3_i32 : i32
    %60 = arith.index_cast %59 : i32 to index
    %61 = memref.load %arg1[%60] : memref<16xi32, #tpu.memory_space<smem>>
    %62 = arith.index_cast %59 : i32 to index
    %63 = memref.load %arg2[%62] : memref<16xi32, #tpu.memory_space<smem>>
    %64 = arith.index_cast %59 : i32 to index
    %65 = memref.load %arg3[%64] : memref<16xi32, #tpu.memory_space<smem>>
    %c0_i32_36 = arith.constant 0 : i32
    %c0_i32_37 = arith.constant 0 : i32
    %66 = tpu.memref_slice %arg4[%61, %c0_i32_37] : memref<32x128xf32, #tpu.memory_space<any>> -> memref<1x128xf32, #tpu.memory_space<any>>
    %c3_i32_38 = arith.constant 3 : i32
    %c0_i32_39 = arith.constant 0 : i32
    %67 = tpu.memref_slice %arg9[%c3_i32_38, %c0_i32_39] : memref<8x128xf32, #tpu.memory_space<vmem>> -> memref<1x128xf32, #tpu.memory_space<vmem>>
    %68 = tpu.memref_slice %arg12[%c0_i32_36] : memref<3x!tpu.dma_semaphore, #tpu.memory_space<semaphore_mem>> -> memref<1x!tpu.dma_semaphore, #tpu.memory_space<semaphore_mem>>
    %69 = tpu.memref_squeeze %68 : memref<1x!tpu.dma_semaphore, #tpu.memory_space<semaphore_mem>> -> memref<!tpu.dma_semaphore, #tpu.memory_space<semaphore_mem>>
    tpu.enqueue_dma source(%66 : memref<1x128xf32, #tpu.memory_space<any>>) target(%67 : memref<1x128xf32, #tpu.memory_space<vmem>>) target_semaphore(%69 : memref<!tpu.dma_semaphore, #tpu.memory_space<semaphore_mem>>)
    %c1_i32_40 = arith.constant 1 : i32
    %c0_i32_41 = arith.constant 0 : i32
    %70 = tpu.memref_slice %arg5[%63, %c0_i32_41] : memref<16x128xf32, #tpu.memory_space<any>> -> memref<1x128xf32, #tpu.memory_space<any>>
    %c3_i32_42 = arith.constant 3 : i32
    %c0_i32_43 = arith.constant 0 : i32
    %71 = tpu.memref_slice %arg10[%c3_i32_42, %c0_i32_43] : memref<8x128xf32, #tpu.memory_space<vmem>> -> memref<1x128xf32, #tpu.memory_space<vmem>>
    %72 = tpu.memref_slice %arg12[%c1_i32_40] : memref<3x!tpu.dma_semaphore, #tpu.memory_space<semaphore_mem>> -> memref<1x!tpu.dma_semaphore, #tpu.memory_space<semaphore_mem>>
    %73 = tpu.memref_squeeze %72 : memref<1x!tpu.dma_semaphore, #tpu.memory_space<semaphore_mem>> -> memref<!tpu.dma_semaphore, #tpu.memory_space<semaphore_mem>>
    tpu.enqueue_dma source(%70 : memref<1x128xf32, #tpu.memory_space<any>>) target(%71 : memref<1x128xf32, #tpu.memory_space<vmem>>) target_semaphore(%73 : memref<!tpu.dma_semaphore, #tpu.memory_space<semaphore_mem>>)
    %c2_i32_44 = arith.constant 2 : i32
    %c0_i32_45 = arith.constant 0 : i32
    %74 = tpu.memref_slice %arg4[%65, %c0_i32_45] : memref<32x128xf32, #tpu.memory_space<any>> -> memref<1x128xf32, #tpu.memory_space<any>>
    %c3_i32_46 = arith.constant 3 : i32
    %c0_i32_47 = arith.constant 0 : i32
    %75 = tpu.memref_slice %arg11[%c3_i32_46, %c0_i32_47] : memref<8x128xf32, #tpu.memory_space<vmem>> -> memref<1x128xf32, #tpu.memory_space<vmem>>
    %76 = tpu.memref_slice %arg12[%c2_i32_44] : memref<3x!tpu.dma_semaphore, #tpu.memory_space<semaphore_mem>> -> memref<1x!tpu.dma_semaphore, #tpu.memory_space<semaphore_mem>>
    %77 = tpu.memref_squeeze %76 : memref<1x!tpu.dma_semaphore, #tpu.memory_space<semaphore_mem>> -> memref<!tpu.dma_semaphore, #tpu.memory_space<semaphore_mem>>
    tpu.enqueue_dma source(%74 : memref<1x128xf32, #tpu.memory_space<any>>) target(%75 : memref<1x128xf32, #tpu.memory_space<vmem>>) target_semaphore(%77 : memref<!tpu.dma_semaphore, #tpu.memory_space<semaphore_mem>>)
    %c4_i32 = arith.constant 4 : i32
    %78 = arith.addi %1, %c4_i32 : i32
    %79 = arith.index_cast %78 : i32 to index
    %80 = memref.load %arg1[%79] : memref<16xi32, #tpu.memory_space<smem>>
    %81 = arith.index_cast %78 : i32 to index
    %82 = memref.load %arg2[%81] : memref<16xi32, #tpu.memory_space<smem>>
    %83 = arith.index_cast %78 : i32 to index
    %84 = memref.load %arg3[%83] : memref<16xi32, #tpu.memory_space<smem>>
    %c0_i32_48 = arith.constant 0 : i32
    %c0_i32_49 = arith.constant 0 : i32
    %85 = tpu.memref_slice %arg4[%80, %c0_i32_49] : memref<32x128xf32, #tpu.memory_space<any>> -> memref<1x128xf32, #tpu.memory_space<any>>
    %c4_i32_50 = arith.constant 4 : i32
    %c0_i32_51 = arith.constant 0 : i32
    %86 = tpu.memref_slice %arg9[%c4_i32_50, %c0_i32_51] : memref<8x128xf32, #tpu.memory_space<vmem>> -> memref<1x128xf32, #tpu.memory_space<vmem>>
    %87 = tpu.memref_slice %arg12[%c0_i32_48] : memref<3x!tpu.dma_semaphore, #tpu.memory_space<semaphore_mem>> -> memref<1x!tpu.dma_semaphore, #tpu.memory_space<semaphore_mem>>
    %88 = tpu.memref_squeeze %87 : memref<1x!tpu.dma_semaphore, #tpu.memory_space<semaphore_mem>> -> memref<!tpu.dma_semaphore, #tpu.memory_space<semaphore_mem>>
    tpu.enqueue_dma source(%85 : memref<1x128xf32, #tpu.memory_space<any>>) target(%86 : memref<1x128xf32, #tpu.memory_space<vmem>>) target_semaphore(%88 : memref<!tpu.dma_semaphore, #tpu.memory_space<semaphore_mem>>)
    %c1_i32_52 = arith.constant 1 : i32
    %c0_i32_53 = arith.constant 0 : i32
    %89 = tpu.memref_slice %arg5[%82, %c0_i32_53] : memref<16x128xf32, #tpu.memory_space<any>> -> memref<1x128xf32, #tpu.memory_space<any>>
    %c4_i32_54 = arith.constant 4 : i32
    %c0_i32_55 = arith.constant 0 : i32
    %90 = tpu.memref_slice %arg10[%c4_i32_54, %c0_i32_55] : memref<8x128xf32, #tpu.memory_space<vmem>> -> memref<1x128xf32, #tpu.memory_space<vmem>>
    %91 = tpu.memref_slice %arg12[%c1_i32_52] : memref<3x!tpu.dma_semaphore, #tpu.memory_space<semaphore_mem>> -> memref<1x!tpu.dma_semaphore, #tpu.memory_space<semaphore_mem>>
    %92 = tpu.memref_squeeze %91 : memref<1x!tpu.dma_semaphore, #tpu.memory_space<semaphore_mem>> -> memref<!tpu.dma_semaphore, #tpu.memory_space<semaphore_mem>>
    tpu.enqueue_dma source(%89 : memref<1x128xf32, #tpu.memory_space<any>>) target(%90 : memref<1x128xf32, #tpu.memory_space<vmem>>) target_semaphore(%92 : memref<!tpu.dma_semaphore, #tpu.memory_space<semaphore_mem>>)
    %c2_i32_56 = arith.constant 2 : i32
    %c0_i32_57 = arith.constant 0 : i32
    %93 = tpu.memref_slice %arg4[%84, %c0_i32_57] : memref<32x128xf32, #tpu.memory_space<any>> -> memref<1x128xf32, #tpu.memory_space<any>>
    %c4_i32_58 = arith.constant 4 : i32
    %c0_i32_59 = arith.constant 0 : i32
    %94 = tpu.memref_slice %arg11[%c4_i32_58, %c0_i32_59] : memref<8x128xf32, #tpu.memory_space<vmem>> -> memref<1x128xf32, #tpu.memory_space<vmem>>
    %95 = tpu.memref_slice %arg12[%c2_i32_56] : memref<3x!tpu.dma_semaphore, #tpu.memory_space<semaphore_mem>> -> memref<1x!tpu.dma_semaphore, #tpu.memory_space<semaphore_mem>>
    %96 = tpu.memref_squeeze %95 : memref<1x!tpu.dma_semaphore, #tpu.memory_space<semaphore_mem>> -> memref<!tpu.dma_semaphore, #tpu.memory_space<semaphore_mem>>
    tpu.enqueue_dma source(%93 : memref<1x128xf32, #tpu.memory_space<any>>) target(%94 : memref<1x128xf32, #tpu.memory_space<vmem>>) target_semaphore(%96 : memref<!tpu.dma_semaphore, #tpu.memory_space<semaphore_mem>>)
    %c5_i32 = arith.constant 5 : i32
    %97 = arith.addi %1, %c5_i32 : i32
    %98 = arith.index_cast %97 : i32 to index
    %99 = memref.load %arg1[%98] : memref<16xi32, #tpu.memory_space<smem>>
    %100 = arith.index_cast %97 : i32 to index
    %101 = memref.load %arg2[%100] : memref<16xi32, #tpu.memory_space<smem>>
    %102 = arith.index_cast %97 : i32 to index
    %103 = memref.load %arg3[%102] : memref<16xi32, #tpu.memory_space<smem>>
    %c0_i32_60 = arith.constant 0 : i32
    %c0_i32_61 = arith.constant 0 : i32
    %104 = tpu.memref_slice %arg4[%99, %c0_i32_61] : memref<32x128xf32, #tpu.memory_space<any>> -> memref<1x128xf32, #tpu.memory_space<any>>
    %c5_i32_62 = arith.constant 5 : i32
    %c0_i32_63 = arith.constant 0 : i32
    %105 = tpu.memref_slice %arg9[%c5_i32_62, %c0_i32_63] : memref<8x128xf32, #tpu.memory_space<vmem>> -> memref<1x128xf32, #tpu.memory_space<vmem>>
    %106 = tpu.memref_slice %arg12[%c0_i32_60] : memref<3x!tpu.dma_semaphore, #tpu.memory_space<semaphore_mem>> -> memref<1x!tpu.dma_semaphore, #tpu.memory_space<semaphore_mem>>
    %107 = tpu.memref_squeeze %106 : memref<1x!tpu.dma_semaphore, #tpu.memory_space<semaphore_mem>> -> memref<!tpu.dma_semaphore, #tpu.memory_space<semaphore_mem>>
    tpu.enqueue_dma source(%104 : memref<1x128xf32, #tpu.memory_space<any>>) target(%105 : memref<1x128xf32, #tpu.memory_space<vmem>>) target_semaphore(%107 : memref<!tpu.dma_semaphore, #tpu.memory_space<semaphore_mem>>)
    %c1_i32_64 = arith.constant 1 : i32
    %c0_i32_65 = arith.constant 0 : i32
    %108 = tpu.memref_slice %arg5[%101, %c0_i32_65] : memref<16x128xf32, #tpu.memory_space<any>> -> memref<1x128xf32, #tpu.memory_space<any>>
    %c5_i32_66 = arith.constant 5 : i32
    %c0_i32_67 = arith.constant 0 : i32
    %109 = tpu.memref_slice %arg10[%c5_i32_66, %c0_i32_67] : memref<8x128xf32, #tpu.memory_space<vmem>> -> memref<1x128xf32, #tpu.memory_space<vmem>>
    %110 = tpu.memref_slice %arg12[%c1_i32_64] : memref<3x!tpu.dma_semaphore, #tpu.memory_space<semaphore_mem>> -> memref<1x!tpu.dma_semaphore, #tpu.memory_space<semaphore_mem>>
    %111 = tpu.memref_squeeze %110 : memref<1x!tpu.dma_semaphore, #tpu.memory_space<semaphore_mem>> -> memref<!tpu.dma_semaphore, #tpu.memory_space<semaphore_mem>>
    tpu.enqueue_dma source(%108 : memref<1x128xf32, #tpu.memory_space<any>>) target(%109 : memref<1x128xf32, #tpu.memory_space<vmem>>) target_semaphore(%111 : memref<!tpu.dma_semaphore, #tpu.memory_space<semaphore_mem>>)
    %c2_i32_68 = arith.constant 2 : i32
    %c0_i32_69 = arith.constant 0 : i32
    %112 = tpu.memref_slice %arg4[%103, %c0_i32_69] : memref<32x128xf32, #tpu.memory_space<any>> -> memref<1x128xf32, #tpu.memory_space<any>>
    %c5_i32_70 = arith.constant 5 : i32
    %c0_i32_71 = arith.constant 0 : i32
    %113 = tpu.memref_slice %arg11[%c5_i32_70, %c0_i32_71] : memref<8x128xf32, #tpu.memory_space<vmem>> -> memref<1x128xf32, #tpu.memory_space<vmem>>
    %114 = tpu.memref_slice %arg12[%c2_i32_68] : memref<3x!tpu.dma_semaphore, #tpu.memory_space<semaphore_mem>> -> memref<1x!tpu.dma_semaphore, #tpu.memory_space<semaphore_mem>>
    %115 = tpu.memref_squeeze %114 : memref<1x!tpu.dma_semaphore, #tpu.memory_space<semaphore_mem>> -> memref<!tpu.dma_semaphore, #tpu.memory_space<semaphore_mem>>
    tpu.enqueue_dma source(%112 : memref<1x128xf32, #tpu.memory_space<any>>) target(%113 : memref<1x128xf32, #tpu.memory_space<vmem>>) target_semaphore(%115 : memref<!tpu.dma_semaphore, #tpu.memory_space<semaphore_mem>>)
    %c6_i32 = arith.constant 6 : i32
    %116 = arith.addi %1, %c6_i32 : i32
    %117 = arith.index_cast %116 : i32 to index
    %118 = memref.load %arg1[%117] : memref<16xi32, #tpu.memory_space<smem>>
    %119 = arith.index_cast %116 : i32 to index
    %120 = memref.load %arg2[%119] : memref<16xi32, #tpu.memory_space<smem>>
    %121 = arith.index_cast %116 : i32 to index
    %122 = memref.load %arg3[%121] : memref<16xi32, #tpu.memory_space<smem>>
    %c0_i32_72 = arith.constant 0 : i32
    %c0_i32_73 = arith.constant 0 : i32
    %123 = tpu.memref_slice %arg4[%118, %c0_i32_73] : memref<32x128xf32, #tpu.memory_space<any>> -> memref<1x128xf32, #tpu.memory_space<any>>
    %c6_i32_74 = arith.constant 6 : i32
    %c0_i32_75 = arith.constant 0 : i32
    %124 = tpu.memref_slice %arg9[%c6_i32_74, %c0_i32_75] : memref<8x128xf32, #tpu.memory_space<vmem>> -> memref<1x128xf32, #tpu.memory_space<vmem>>
    %125 = tpu.memref_slice %arg12[%c0_i32_72] : memref<3x!tpu.dma_semaphore, #tpu.memory_space<semaphore_mem>> -> memref<1x!tpu.dma_semaphore, #tpu.memory_space<semaphore_mem>>
    %126 = tpu.memref_squeeze %125 : memref<1x!tpu.dma_semaphore, #tpu.memory_space<semaphore_mem>> -> memref<!tpu.dma_semaphore, #tpu.memory_space<semaphore_mem>>
    tpu.enqueue_dma source(%123 : memref<1x128xf32, #tpu.memory_space<any>>) target(%124 : memref<1x128xf32, #tpu.memory_space<vmem>>) target_semaphore(%126 : memref<!tpu.dma_semaphore, #tpu.memory_space<semaphore_mem>>)
    %c1_i32_76 = arith.constant 1 : i32
    %c0_i32_77 = arith.constant 0 : i32
    %127 = tpu.memref_slice %arg5[%120, %c0_i32_77] : memref<16x128xf32, #tpu.memory_space<any>> -> memref<1x128xf32, #tpu.memory_space<any>>
    %c6_i32_78 = arith.constant 6 : i32
    %c0_i32_79 = arith.constant 0 : i32
    %128 = tpu.memref_slice %arg10[%c6_i32_78, %c0_i32_79] : memref<8x128xf32, #tpu.memory_space<vmem>> -> memref<1x128xf32, #tpu.memory_space<vmem>>
    %129 = tpu.memref_slice %arg12[%c1_i32_76] : memref<3x!tpu.dma_semaphore, #tpu.memory_space<semaphore_mem>> -> memref<1x!tpu.dma_semaphore, #tpu.memory_space<semaphore_mem>>
    %130 = tpu.memref_squeeze %129 : memref<1x!tpu.dma_semaphore, #tpu.memory_space<semaphore_mem>> -> memref<!tpu.dma_semaphore, #tpu.memory_space<semaphore_mem>>
    tpu.enqueue_dma source(%127 : memref<1x128xf32, #tpu.memory_space<any>>) target(%128 : memref<1x128xf32, #tpu.memory_space<vmem>>) target_semaphore(%130 : memref<!tpu.dma_semaphore, #tpu.memory_space<semaphore_mem>>)
    %c2_i32_80 = arith.constant 2 : i32
    %c0_i32_81 = arith.constant 0 : i32
    %131 = tpu.memref_slice %arg4[%122, %c0_i32_81] : memref<32x128xf32, #tpu.memory_space<any>> -> memref<1x128xf32, #tpu.memory_space<any>>
    %c6_i32_82 = arith.constant 6 : i32
    %c0_i32_83 = arith.constant 0 : i32
    %132 = tpu.memref_slice %arg11[%c6_i32_82, %c0_i32_83] : memref<8x128xf32, #tpu.memory_space<vmem>> -> memref<1x128xf32, #tpu.memory_space<vmem>>
    %133 = tpu.memref_slice %arg12[%c2_i32_80] : memref<3x!tpu.dma_semaphore, #tpu.memory_space<semaphore_mem>> -> memref<1x!tpu.dma_semaphore, #tpu.memory_space<semaphore_mem>>
    %134 = tpu.memref_squeeze %133 : memref<1x!tpu.dma_semaphore, #tpu.memory_space<semaphore_mem>> -> memref<!tpu.dma_semaphore, #tpu.memory_space<semaphore_mem>>
    tpu.enqueue_dma source(%131 : memref<1x128xf32, #tpu.memory_space<any>>) target(%132 : memref<1x128xf32, #tpu.memory_space<vmem>>) target_semaphore(%134 : memref<!tpu.dma_semaphore, #tpu.memory_space<semaphore_mem>>)
    %c7_i32 = arith.constant 7 : i32
    %135 = arith.addi %1, %c7_i32 : i32
    %136 = arith.index_cast %135 : i32 to index
    %137 = memref.load %arg1[%136] : memref<16xi32, #tpu.memory_space<smem>>
    %138 = arith.index_cast %135 : i32 to index
    %139 = memref.load %arg2[%138] : memref<16xi32, #tpu.memory_space<smem>>
    %140 = arith.index_cast %135 : i32 to index
    %141 = memref.load %arg3[%140] : memref<16xi32, #tpu.memory_space<smem>>
    %c0_i32_84 = arith.constant 0 : i32
    %c0_i32_85 = arith.constant 0 : i32
    %142 = tpu.memref_slice %arg4[%137, %c0_i32_85] : memref<32x128xf32, #tpu.memory_space<any>> -> memref<1x128xf32, #tpu.memory_space<any>>
    %c7_i32_86 = arith.constant 7 : i32
    %c0_i32_87 = arith.constant 0 : i32
    %143 = tpu.memref_slice %arg9[%c7_i32_86, %c0_i32_87] : memref<8x128xf32, #tpu.memory_space<vmem>> -> memref<1x128xf32, #tpu.memory_space<vmem>>
    %144 = tpu.memref_slice %arg12[%c0_i32_84] : memref<3x!tpu.dma_semaphore, #tpu.memory_space<semaphore_mem>> -> memref<1x!tpu.dma_semaphore, #tpu.memory_space<semaphore_mem>>
    %145 = tpu.memref_squeeze %144 : memref<1x!tpu.dma_semaphore, #tpu.memory_space<semaphore_mem>> -> memref<!tpu.dma_semaphore, #tpu.memory_space<semaphore_mem>>
    tpu.enqueue_dma source(%142 : memref<1x128xf32, #tpu.memory_space<any>>) target(%143 : memref<1x128xf32, #tpu.memory_space<vmem>>) target_semaphore(%145 : memref<!tpu.dma_semaphore, #tpu.memory_space<semaphore_mem>>)
    %c1_i32_88 = arith.constant 1 : i32
    %c0_i32_89 = arith.constant 0 : i32
    %146 = tpu.memref_slice %arg5[%139, %c0_i32_89] : memref<16x128xf32, #tpu.memory_space<any>> -> memref<1x128xf32, #tpu.memory_space<any>>
    %c7_i32_90 = arith.constant 7 : i32
    %c0_i32_91 = arith.constant 0 : i32
    %147 = tpu.memref_slice %arg10[%c7_i32_90, %c0_i32_91] : memref<8x128xf32, #tpu.memory_space<vmem>> -> memref<1x128xf32, #tpu.memory_space<vmem>>
    %148 = tpu.memref_slice %arg12[%c1_i32_88] : memref<3x!tpu.dma_semaphore, #tpu.memory_space<semaphore_mem>> -> memref<1x!tpu.dma_semaphore, #tpu.memory_space<semaphore_mem>>
    %149 = tpu.memref_squeeze %148 : memref<1x!tpu.dma_semaphore, #tpu.memory_space<semaphore_mem>> -> memref<!tpu.dma_semaphore, #tpu.memory_space<semaphore_mem>>
    tpu.enqueue_dma source(%146 : memref<1x128xf32, #tpu.memory_space<any>>) target(%147 : memref<1x128xf32, #tpu.memory_space<vmem>>) target_semaphore(%149 : memref<!tpu.dma_semaphore, #tpu.memory_space<semaphore_mem>>)
    %c2_i32_92 = arith.constant 2 : i32
    %c0_i32_93 = arith.constant 0 : i32
    %150 = tpu.memref_slice %arg4[%141, %c0_i32_93] : memref<32x128xf32, #tpu.memory_space<any>> -> memref<1x128xf32, #tpu.memory_space<any>>
    %c7_i32_94 = arith.constant 7 : i32
    %c0_i32_95 = arith.constant 0 : i32
    %151 = tpu.memref_slice %arg11[%c7_i32_94, %c0_i32_95] : memref<8x128xf32, #tpu.memory_space<vmem>> -> memref<1x128xf32, #tpu.memory_space<vmem>>
    %152 = tpu.memref_slice %arg12[%c2_i32_92] : memref<3x!tpu.dma_semaphore, #tpu.memory_space<semaphore_mem>> -> memref<1x!tpu.dma_semaphore, #tpu.memory_space<semaphore_mem>>
    %153 = tpu.memref_squeeze %152 : memref<1x!tpu.dma_semaphore, #tpu.memory_space<semaphore_mem>> -> memref<!tpu.dma_semaphore, #tpu.memory_space<semaphore_mem>>
    tpu.enqueue_dma source(%150 : memref<1x128xf32, #tpu.memory_space<any>>) target(%151 : memref<1x128xf32, #tpu.memory_space<vmem>>) target_semaphore(%153 : memref<!tpu.dma_semaphore, #tpu.memory_space<semaphore_mem>>)
    %c0_i32_96 = arith.constant 0 : i32
    %c0_i32_97 = arith.constant 0 : i32
    %c0_i32_98 = arith.constant 0 : i32
    %154 = tpu.memref_slice %arg4[%c0_i32_97, %c0_i32_98] : memref<32x128xf32, #tpu.memory_space<any>> -> memref<1x128xf32, #tpu.memory_space<any>>
    %c0_i32_99 = arith.constant 0 : i32
    %c0_i32_100 = arith.constant 0 : i32
    %155 = tpu.memref_slice %arg9[%c0_i32_99, %c0_i32_100] : memref<8x128xf32, #tpu.memory_space<vmem>> -> memref<1x128xf32, #tpu.memory_space<vmem>>
    %156 = tpu.memref_slice %arg12[%c0_i32_96] : memref<3x!tpu.dma_semaphore, #tpu.memory_space<semaphore_mem>> -> memref<1x!tpu.dma_semaphore, #tpu.memory_space<semaphore_mem>>
    %157 = tpu.memref_squeeze %156 : memref<1x!tpu.dma_semaphore, #tpu.memory_space<semaphore_mem>> -> memref<!tpu.dma_semaphore, #tpu.memory_space<semaphore_mem>>
    tpu.wait_dma2 semaphore(%157 : memref<!tpu.dma_semaphore, #tpu.memory_space<semaphore_mem>>) src(%154 : memref<1x128xf32, #tpu.memory_space<any>>) dst(%155 : memref<1x128xf32, #tpu.memory_space<vmem>>)
    %c1_i32_101 = arith.constant 1 : i32
    %c0_i32_102 = arith.constant 0 : i32
    %c0_i32_103 = arith.constant 0 : i32
    %158 = tpu.memref_slice %arg5[%c0_i32_102, %c0_i32_103] : memref<16x128xf32, #tpu.memory_space<any>> -> memref<1x128xf32, #tpu.memory_space<any>>
    %c0_i32_104 = arith.constant 0 : i32
    %c0_i32_105 = arith.constant 0 : i32
    %159 = tpu.memref_slice %arg10[%c0_i32_104, %c0_i32_105] : memref<8x128xf32, #tpu.memory_space<vmem>> -> memref<1x128xf32, #tpu.memory_space<vmem>>
    %160 = tpu.memref_slice %arg12[%c1_i32_101] : memref<3x!tpu.dma_semaphore, #tpu.memory_space<semaphore_mem>> -> memref<1x!tpu.dma_semaphore, #tpu.memory_space<semaphore_mem>>
    %161 = tpu.memref_squeeze %160 : memref<1x!tpu.dma_semaphore, #tpu.memory_space<semaphore_mem>> -> memref<!tpu.dma_semaphore, #tpu.memory_space<semaphore_mem>>
    tpu.wait_dma2 semaphore(%161 : memref<!tpu.dma_semaphore, #tpu.memory_space<semaphore_mem>>) src(%158 : memref<1x128xf32, #tpu.memory_space<any>>) dst(%159 : memref<1x128xf32, #tpu.memory_space<vmem>>)
    %c2_i32_106 = arith.constant 2 : i32
    %c0_i32_107 = arith.constant 0 : i32
    %c0_i32_108 = arith.constant 0 : i32
    %162 = tpu.memref_slice %arg4[%c0_i32_107, %c0_i32_108] : memref<32x128xf32, #tpu.memory_space<any>> -> memref<1x128xf32, #tpu.memory_space<any>>
    %c0_i32_109 = arith.constant 0 : i32
    %c0_i32_110 = arith.constant 0 : i32
    %163 = tpu.memref_slice %arg11[%c0_i32_109, %c0_i32_110] : memref<8x128xf32, #tpu.memory_space<vmem>> -> memref<1x128xf32, #tpu.memory_space<vmem>>
    %164 = tpu.memref_slice %arg12[%c2_i32_106] : memref<3x!tpu.dma_semaphore, #tpu.memory_space<semaphore_mem>> -> memref<1x!tpu.dma_semaphore, #tpu.memory_space<semaphore_mem>>
    %165 = tpu.memref_squeeze %164 : memref<1x!tpu.dma_semaphore, #tpu.memory_space<semaphore_mem>> -> memref<!tpu.dma_semaphore, #tpu.memory_space<semaphore_mem>>
    tpu.wait_dma2 semaphore(%165 : memref<!tpu.dma_semaphore, #tpu.memory_space<semaphore_mem>>) src(%162 : memref<1x128xf32, #tpu.memory_space<any>>) dst(%163 : memref<1x128xf32, #tpu.memory_space<vmem>>)
    %c0_i32_111 = arith.constant 0 : i32
    %c0_i32_112 = arith.constant 0 : i32
    %c0_i32_113 = arith.constant 0 : i32
    %166 = tpu.memref_slice %arg4[%c0_i32_112, %c0_i32_113] : memref<32x128xf32, #tpu.memory_space<any>> -> memref<1x128xf32, #tpu.memory_space<any>>
    %c1_i32_114 = arith.constant 1 : i32
    %c0_i32_115 = arith.constant 0 : i32
    %167 = tpu.memref_slice %arg9[%c1_i32_114, %c0_i32_115] : memref<8x128xf32, #tpu.memory_space<vmem>> -> memref<1x128xf32, #tpu.memory_space<vmem>>
    %168 = tpu.memref_slice %arg12[%c0_i32_111] : memref<3x!tpu.dma_semaphore, #tpu.memory_space<semaphore_mem>> -> memref<1x!tpu.dma_semaphore, #tpu.memory_space<semaphore_mem>>
    %169 = tpu.memref_squeeze %168 : memref<1x!tpu.dma_semaphore, #tpu.memory_space<semaphore_mem>> -> memref<!tpu.dma_semaphore, #tpu.memory_space<semaphore_mem>>
    tpu.wait_dma2 semaphore(%169 : memref<!tpu.dma_semaphore, #tpu.memory_space<semaphore_mem>>) src(%166 : memref<1x128xf32, #tpu.memory_space<any>>) dst(%167 : memref<1x128xf32, #tpu.memory_space<vmem>>)
    %c1_i32_116 = arith.constant 1 : i32
    %c0_i32_117 = arith.constant 0 : i32
    %c0_i32_118 = arith.constant 0 : i32
    %170 = tpu.memref_slice %arg5[%c0_i32_117, %c0_i32_118] : memref<16x128xf32, #tpu.memory_space<any>> -> memref<1x128xf32, #tpu.memory_space<any>>
    %c1_i32_119 = arith.constant 1 : i32
    %c0_i32_120 = arith.constant 0 : i32
    %171 = tpu.memref_slice %arg10[%c1_i32_119, %c0_i32_120] : memref<8x128xf32, #tpu.memory_space<vmem>> -> memref<1x128xf32, #tpu.memory_space<vmem>>
    %172 = tpu.memref_slice %arg12[%c1_i32_116] : memref<3x!tpu.dma_semaphore, #tpu.memory_space<semaphore_mem>> -> memref<1x!tpu.dma_semaphore, #tpu.memory_space<semaphore_mem>>
    %173 = tpu.memref_squeeze %172 : memref<1x!tpu.dma_semaphore, #tpu.memory_space<semaphore_mem>> -> memref<!tpu.dma_semaphore, #tpu.memory_space<semaphore_mem>>
    tpu.wait_dma2 semaphore(%173 : memref<!tpu.dma_semaphore, #tpu.memory_space<semaphore_mem>>) src(%170 : memref<1x128xf32, #tpu.memory_space<any>>) dst(%171 : memref<1x128xf32, #tpu.memory_space<vmem>>)
    %c2_i32_121 = arith.constant 2 : i32
    %c0_i32_122 = arith.constant 0 : i32
    %c0_i32_123 = arith.constant 0 : i32
    %174 = tpu.memref_slice %arg4[%c0_i32_122, %c0_i32_123] : memref<32x128xf32, #tpu.memory_space<any>> -> memref<1x128xf32, #tpu.memory_space<any>>
    %c1_i32_124 = arith.constant 1 : i32
    %c0_i32_125 = arith.constant 0 : i32
    %175 = tpu.memref_slice %arg11[%c1_i32_124, %c0_i32_125] : memref<8x128xf32, #tpu.memory_space<vmem>> -> memref<1x128xf32, #tpu.memory_space<vmem>>
    %176 = tpu.memref_slice %arg12[%c2_i32_121] : memref<3x!tpu.dma_semaphore, #tpu.memory_space<semaphore_mem>> -> memref<1x!tpu.dma_semaphore, #tpu.memory_space<semaphore_mem>>
    %177 = tpu.memref_squeeze %176 : memref<1x!tpu.dma_semaphore, #tpu.memory_space<semaphore_mem>> -> memref<!tpu.dma_semaphore, #tpu.memory_space<semaphore_mem>>
    tpu.wait_dma2 semaphore(%177 : memref<!tpu.dma_semaphore, #tpu.memory_space<semaphore_mem>>) src(%174 : memref<1x128xf32, #tpu.memory_space<any>>) dst(%175 : memref<1x128xf32, #tpu.memory_space<vmem>>)
    %c0_i32_126 = arith.constant 0 : i32
    %c0_i32_127 = arith.constant 0 : i32
    %c0_i32_128 = arith.constant 0 : i32
    %178 = tpu.memref_slice %arg4[%c0_i32_127, %c0_i32_128] : memref<32x128xf32, #tpu.memory_space<any>> -> memref<1x128xf32, #tpu.memory_space<any>>
    %c2_i32_129 = arith.constant 2 : i32
    %c0_i32_130 = arith.constant 0 : i32
    %179 = tpu.memref_slice %arg9[%c2_i32_129, %c0_i32_130] : memref<8x128xf32, #tpu.memory_space<vmem>> -> memref<1x128xf32, #tpu.memory_space<vmem>>
    %180 = tpu.memref_slice %arg12[%c0_i32_126] : memref<3x!tpu.dma_semaphore, #tpu.memory_space<semaphore_mem>> -> memref<1x!tpu.dma_semaphore, #tpu.memory_space<semaphore_mem>>
    %181 = tpu.memref_squeeze %180 : memref<1x!tpu.dma_semaphore, #tpu.memory_space<semaphore_mem>> -> memref<!tpu.dma_semaphore, #tpu.memory_space<semaphore_mem>>
    tpu.wait_dma2 semaphore(%181 : memref<!tpu.dma_semaphore, #tpu.memory_space<semaphore_mem>>) src(%178 : memref<1x128xf32, #tpu.memory_space<any>>) dst(%179 : memref<1x128xf32, #tpu.memory_space<vmem>>)
    %c1_i32_131 = arith.constant 1 : i32
    %c0_i32_132 = arith.constant 0 : i32
    %c0_i32_133 = arith.constant 0 : i32
    %182 = tpu.memref_slice %arg5[%c0_i32_132, %c0_i32_133] : memref<16x128xf32, #tpu.memory_space<any>> -> memref<1x128xf32, #tpu.memory_space<any>>
    %c2_i32_134 = arith.constant 2 : i32
    %c0_i32_135 = arith.constant 0 : i32
    %183 = tpu.memref_slice %arg10[%c2_i32_134, %c0_i32_135] : memref<8x128xf32, #tpu.memory_space<vmem>> -> memref<1x128xf32, #tpu.memory_space<vmem>>
    %184 = tpu.memref_slice %arg12[%c1_i32_131] : memref<3x!tpu.dma_semaphore, #tpu.memory_space<semaphore_mem>> -> memref<1x!tpu.dma_semaphore, #tpu.memory_space<semaphore_mem>>
    %185 = tpu.memref_squeeze %184 : memref<1x!tpu.dma_semaphore, #tpu.memory_space<semaphore_mem>> -> memref<!tpu.dma_semaphore, #tpu.memory_space<semaphore_mem>>
    tpu.wait_dma2 semaphore(%185 : memref<!tpu.dma_semaphore, #tpu.memory_space<semaphore_mem>>) src(%182 : memref<1x128xf32, #tpu.memory_space<any>>) dst(%183 : memref<1x128xf32, #tpu.memory_space<vmem>>)
    %c2_i32_136 = arith.constant 2 : i32
    %c0_i32_137 = arith.constant 0 : i32
    %c0_i32_138 = arith.constant 0 : i32
    %186 = tpu.memref_slice %arg4[%c0_i32_137, %c0_i32_138] : memref<32x128xf32, #tpu.memory_space<any>> -> memref<1x128xf32, #tpu.memory_space<any>>
    %c2_i32_139 = arith.constant 2 : i32
    %c0_i32_140 = arith.constant 0 : i32
    %187 = tpu.memref_slice %arg11[%c2_i32_139, %c0_i32_140] : memref<8x128xf32, #tpu.memory_space<vmem>> -> memref<1x128xf32, #tpu.memory_space<vmem>>
    %188 = tpu.memref_slice %arg12[%c2_i32_136] : memref<3x!tpu.dma_semaphore, #tpu.memory_space<semaphore_mem>> -> memref<1x!tpu.dma_semaphore, #tpu.memory_space<semaphore_mem>>
    %189 = tpu.memref_squeeze %188 : memref<1x!tpu.dma_semaphore, #tpu.memory_space<semaphore_mem>> -> memref<!tpu.dma_semaphore, #tpu.memory_space<semaphore_mem>>
    tpu.wait_dma2 semaphore(%189 : memref<!tpu.dma_semaphore, #tpu.memory_space<semaphore_mem>>) src(%186 : memref<1x128xf32, #tpu.memory_space<any>>) dst(%187 : memref<1x128xf32, #tpu.memory_space<vmem>>)
    %c0_i32_141 = arith.constant 0 : i32
    %c0_i32_142 = arith.constant 0 : i32
    %c0_i32_143 = arith.constant 0 : i32
    %190 = tpu.memref_slice %arg4[%c0_i32_142, %c0_i32_143] : memref<32x128xf32, #tpu.memory_space<any>> -> memref<1x128xf32, #tpu.memory_space<any>>
    %c3_i32_144 = arith.constant 3 : i32
    %c0_i32_145 = arith.constant 0 : i32
    %191 = tpu.memref_slice %arg9[%c3_i32_144, %c0_i32_145] : memref<8x128xf32, #tpu.memory_space<vmem>> -> memref<1x128xf32, #tpu.memory_space<vmem>>
    %192 = tpu.memref_slice %arg12[%c0_i32_141] : memref<3x!tpu.dma_semaphore, #tpu.memory_space<semaphore_mem>> -> memref<1x!tpu.dma_semaphore, #tpu.memory_space<semaphore_mem>>
    %193 = tpu.memref_squeeze %192 : memref<1x!tpu.dma_semaphore, #tpu.memory_space<semaphore_mem>> -> memref<!tpu.dma_semaphore, #tpu.memory_space<semaphore_mem>>
    tpu.wait_dma2 semaphore(%193 : memref<!tpu.dma_semaphore, #tpu.memory_space<semaphore_mem>>) src(%190 : memref<1x128xf32, #tpu.memory_space<any>>) dst(%191 : memref<1x128xf32, #tpu.memory_space<vmem>>)
    %c1_i32_146 = arith.constant 1 : i32
    %c0_i32_147 = arith.constant 0 : i32
    %c0_i32_148 = arith.constant 0 : i32
    %194 = tpu.memref_slice %arg5[%c0_i32_147, %c0_i32_148] : memref<16x128xf32, #tpu.memory_space<any>> -> memref<1x128xf32, #tpu.memory_space<any>>
    %c3_i32_149 = arith.constant 3 : i32
    %c0_i32_150 = arith.constant 0 : i32
    %195 = tpu.memref_slice %arg10[%c3_i32_149, %c0_i32_150] : memref<8x128xf32, #tpu.memory_space<vmem>> -> memref<1x128xf32, #tpu.memory_space<vmem>>
    %196 = tpu.memref_slice %arg12[%c1_i32_146] : memref<3x!tpu.dma_semaphore, #tpu.memory_space<semaphore_mem>> -> memref<1x!tpu.dma_semaphore, #tpu.memory_space<semaphore_mem>>
    %197 = tpu.memref_squeeze %196 : memref<1x!tpu.dma_semaphore, #tpu.memory_space<semaphore_mem>> -> memref<!tpu.dma_semaphore, #tpu.memory_space<semaphore_mem>>
    tpu.wait_dma2 semaphore(%197 : memref<!tpu.dma_semaphore, #tpu.memory_space<semaphore_mem>>) src(%194 : memref<1x128xf32, #tpu.memory_space<any>>) dst(%195 : memref<1x128xf32, #tpu.memory_space<vmem>>)
    %c2_i32_151 = arith.constant 2 : i32
    %c0_i32_152 = arith.constant 0 : i32
    %c0_i32_153 = arith.constant 0 : i32
    %198 = tpu.memref_slice %arg4[%c0_i32_152, %c0_i32_153] : memref<32x128xf32, #tpu.memory_space<any>> -> memref<1x128xf32, #tpu.memory_space<any>>
    %c3_i32_154 = arith.constant 3 : i32
    %c0_i32_155 = arith.constant 0 : i32
    %199 = tpu.memref_slice %arg11[%c3_i32_154, %c0_i32_155] : memref<8x128xf32, #tpu.memory_space<vmem>> -> memref<1x128xf32, #tpu.memory_space<vmem>>
    %200 = tpu.memref_slice %arg12[%c2_i32_151] : memref<3x!tpu.dma_semaphore, #tpu.memory_space<semaphore_mem>> -> memref<1x!tpu.dma_semaphore, #tpu.memory_space<semaphore_mem>>
    %201 = tpu.memref_squeeze %200 : memref<1x!tpu.dma_semaphore, #tpu.memory_space<semaphore_mem>> -> memref<!tpu.dma_semaphore, #tpu.memory_space<semaphore_mem>>
    tpu.wait_dma2 semaphore(%201 : memref<!tpu.dma_semaphore, #tpu.memory_space<semaphore_mem>>) src(%198 : memref<1x128xf32, #tpu.memory_space<any>>) dst(%199 : memref<1x128xf32, #tpu.memory_space<vmem>>)
    %c0_i32_156 = arith.constant 0 : i32
    %c0_i32_157 = arith.constant 0 : i32
    %c0_i32_158 = arith.constant 0 : i32
    %202 = tpu.memref_slice %arg4[%c0_i32_157, %c0_i32_158] : memref<32x128xf32, #tpu.memory_space<any>> -> memref<1x128xf32, #tpu.memory_space<any>>
    %c4_i32_159 = arith.constant 4 : i32
    %c0_i32_160 = arith.constant 0 : i32
    %203 = tpu.memref_slice %arg9[%c4_i32_159, %c0_i32_160] : memref<8x128xf32, #tpu.memory_space<vmem>> -> memref<1x128xf32, #tpu.memory_space<vmem>>
    %204 = tpu.memref_slice %arg12[%c0_i32_156] : memref<3x!tpu.dma_semaphore, #tpu.memory_space<semaphore_mem>> -> memref<1x!tpu.dma_semaphore, #tpu.memory_space<semaphore_mem>>
    %205 = tpu.memref_squeeze %204 : memref<1x!tpu.dma_semaphore, #tpu.memory_space<semaphore_mem>> -> memref<!tpu.dma_semaphore, #tpu.memory_space<semaphore_mem>>
    tpu.wait_dma2 semaphore(%205 : memref<!tpu.dma_semaphore, #tpu.memory_space<semaphore_mem>>) src(%202 : memref<1x128xf32, #tpu.memory_space<any>>) dst(%203 : memref<1x128xf32, #tpu.memory_space<vmem>>)
    %c1_i32_161 = arith.constant 1 : i32
    %c0_i32_162 = arith.constant 0 : i32
    %c0_i32_163 = arith.constant 0 : i32
    %206 = tpu.memref_slice %arg5[%c0_i32_162, %c0_i32_163] : memref<16x128xf32, #tpu.memory_space<any>> -> memref<1x128xf32, #tpu.memory_space<any>>
    %c4_i32_164 = arith.constant 4 : i32
    %c0_i32_165 = arith.constant 0 : i32
    %207 = tpu.memref_slice %arg10[%c4_i32_164, %c0_i32_165] : memref<8x128xf32, #tpu.memory_space<vmem>> -> memref<1x128xf32, #tpu.memory_space<vmem>>
    %208 = tpu.memref_slice %arg12[%c1_i32_161] : memref<3x!tpu.dma_semaphore, #tpu.memory_space<semaphore_mem>> -> memref<1x!tpu.dma_semaphore, #tpu.memory_space<semaphore_mem>>
    %209 = tpu.memref_squeeze %208 : memref<1x!tpu.dma_semaphore, #tpu.memory_space<semaphore_mem>> -> memref<!tpu.dma_semaphore, #tpu.memory_space<semaphore_mem>>
    tpu.wait_dma2 semaphore(%209 : memref<!tpu.dma_semaphore, #tpu.memory_space<semaphore_mem>>) src(%206 : memref<1x128xf32, #tpu.memory_space<any>>) dst(%207 : memref<1x128xf32, #tpu.memory_space<vmem>>)
    %c2_i32_166 = arith.constant 2 : i32
    %c0_i32_167 = arith.constant 0 : i32
    %c0_i32_168 = arith.constant 0 : i32
    %210 = tpu.memref_slice %arg4[%c0_i32_167, %c0_i32_168] : memref<32x128xf32, #tpu.memory_space<any>> -> memref<1x128xf32, #tpu.memory_space<any>>
    %c4_i32_169 = arith.constant 4 : i32
    %c0_i32_170 = arith.constant 0 : i32
    %211 = tpu.memref_slice %arg11[%c4_i32_169, %c0_i32_170] : memref<8x128xf32, #tpu.memory_space<vmem>> -> memref<1x128xf32, #tpu.memory_space<vmem>>
    %212 = tpu.memref_slice %arg12[%c2_i32_166] : memref<3x!tpu.dma_semaphore, #tpu.memory_space<semaphore_mem>> -> memref<1x!tpu.dma_semaphore, #tpu.memory_space<semaphore_mem>>
    %213 = tpu.memref_squeeze %212 : memref<1x!tpu.dma_semaphore, #tpu.memory_space<semaphore_mem>> -> memref<!tpu.dma_semaphore, #tpu.memory_space<semaphore_mem>>
    tpu.wait_dma2 semaphore(%213 : memref<!tpu.dma_semaphore, #tpu.memory_space<semaphore_mem>>) src(%210 : memref<1x128xf32, #tpu.memory_space<any>>) dst(%211 : memref<1x128xf32, #tpu.memory_space<vmem>>)
    %c0_i32_171 = arith.constant 0 : i32
    %c0_i32_172 = arith.constant 0 : i32
    %c0_i32_173 = arith.constant 0 : i32
    %214 = tpu.memref_slice %arg4[%c0_i32_172, %c0_i32_173] : memref<32x128xf32, #tpu.memory_space<any>> -> memref<1x128xf32, #tpu.memory_space<any>>
    %c5_i32_174 = arith.constant 5 : i32
    %c0_i32_175 = arith.constant 0 : i32
    %215 = tpu.memref_slice %arg9[%c5_i32_174, %c0_i32_175] : memref<8x128xf32, #tpu.memory_space<vmem>> -> memref<1x128xf32, #tpu.memory_space<vmem>>
    %216 = tpu.memref_slice %arg12[%c0_i32_171] : memref<3x!tpu.dma_semaphore, #tpu.memory_space<semaphore_mem>> -> memref<1x!tpu.dma_semaphore, #tpu.memory_space<semaphore_mem>>
    %217 = tpu.memref_squeeze %216 : memref<1x!tpu.dma_semaphore, #tpu.memory_space<semaphore_mem>> -> memref<!tpu.dma_semaphore, #tpu.memory_space<semaphore_mem>>
    tpu.wait_dma2 semaphore(%217 : memref<!tpu.dma_semaphore, #tpu.memory_space<semaphore_mem>>) src(%214 : memref<1x128xf32, #tpu.memory_space<any>>) dst(%215 : memref<1x128xf32, #tpu.memory_space<vmem>>)
    %c1_i32_176 = arith.constant 1 : i32
    %c0_i32_177 = arith.constant 0 : i32
    %c0_i32_178 = arith.constant 0 : i32
    %218 = tpu.memref_slice %arg5[%c0_i32_177, %c0_i32_178] : memref<16x128xf32, #tpu.memory_space<any>> -> memref<1x128xf32, #tpu.memory_space<any>>
    %c5_i32_179 = arith.constant 5 : i32
    %c0_i32_180 = arith.constant 0 : i32
    %219 = tpu.memref_slice %arg10[%c5_i32_179, %c0_i32_180] : memref<8x128xf32, #tpu.memory_space<vmem>> -> memref<1x128xf32, #tpu.memory_space<vmem>>
    %220 = tpu.memref_slice %arg12[%c1_i32_176] : memref<3x!tpu.dma_semaphore, #tpu.memory_space<semaphore_mem>> -> memref<1x!tpu.dma_semaphore, #tpu.memory_space<semaphore_mem>>
    %221 = tpu.memref_squeeze %220 : memref<1x!tpu.dma_semaphore, #tpu.memory_space<semaphore_mem>> -> memref<!tpu.dma_semaphore, #tpu.memory_space<semaphore_mem>>
    tpu.wait_dma2 semaphore(%221 : memref<!tpu.dma_semaphore, #tpu.memory_space<semaphore_mem>>) src(%218 : memref<1x128xf32, #tpu.memory_space<any>>) dst(%219 : memref<1x128xf32, #tpu.memory_space<vmem>>)
    %c2_i32_181 = arith.constant 2 : i32
    %c0_i32_182 = arith.constant 0 : i32
    %c0_i32_183 = arith.constant 0 : i32
    %222 = tpu.memref_slice %arg4[%c0_i32_182, %c0_i32_183] : memref<32x128xf32, #tpu.memory_space<any>> -> memref<1x128xf32, #tpu.memory_space<any>>
    %c5_i32_184 = arith.constant 5 : i32
    %c0_i32_185 = arith.constant 0 : i32
    %223 = tpu.memref_slice %arg11[%c5_i32_184, %c0_i32_185] : memref<8x128xf32, #tpu.memory_space<vmem>> -> memref<1x128xf32, #tpu.memory_space<vmem>>
    %224 = tpu.memref_slice %arg12[%c2_i32_181] : memref<3x!tpu.dma_semaphore, #tpu.memory_space<semaphore_mem>> -> memref<1x!tpu.dma_semaphore, #tpu.memory_space<semaphore_mem>>
    %225 = tpu.memref_squeeze %224 : memref<1x!tpu.dma_semaphore, #tpu.memory_space<semaphore_mem>> -> memref<!tpu.dma_semaphore, #tpu.memory_space<semaphore_mem>>
    tpu.wait_dma2 semaphore(%225 : memref<!tpu.dma_semaphore, #tpu.memory_space<semaphore_mem>>) src(%222 : memref<1x128xf32, #tpu.memory_space<any>>) dst(%223 : memref<1x128xf32, #tpu.memory_space<vmem>>)
    %c0_i32_186 = arith.constant 0 : i32
    %c0_i32_187 = arith.constant 0 : i32
    %c0_i32_188 = arith.constant 0 : i32
    %226 = tpu.memref_slice %arg4[%c0_i32_187, %c0_i32_188] : memref<32x128xf32, #tpu.memory_space<any>> -> memref<1x128xf32, #tpu.memory_space<any>>
    %c6_i32_189 = arith.constant 6 : i32
    %c0_i32_190 = arith.constant 0 : i32
    %227 = tpu.memref_slice %arg9[%c6_i32_189, %c0_i32_190] : memref<8x128xf32, #tpu.memory_space<vmem>> -> memref<1x128xf32, #tpu.memory_space<vmem>>
    %228 = tpu.memref_slice %arg12[%c0_i32_186] : memref<3x!tpu.dma_semaphore, #tpu.memory_space<semaphore_mem>> -> memref<1x!tpu.dma_semaphore, #tpu.memory_space<semaphore_mem>>
    %229 = tpu.memref_squeeze %228 : memref<1x!tpu.dma_semaphore, #tpu.memory_space<semaphore_mem>> -> memref<!tpu.dma_semaphore, #tpu.memory_space<semaphore_mem>>
    tpu.wait_dma2 semaphore(%229 : memref<!tpu.dma_semaphore, #tpu.memory_space<semaphore_mem>>) src(%226 : memref<1x128xf32, #tpu.memory_space<any>>) dst(%227 : memref<1x128xf32, #tpu.memory_space<vmem>>)
    %c1_i32_191 = arith.constant 1 : i32
    %c0_i32_192 = arith.constant 0 : i32
    %c0_i32_193 = arith.constant 0 : i32
    %230 = tpu.memref_slice %arg5[%c0_i32_192, %c0_i32_193] : memref<16x128xf32, #tpu.memory_space<any>> -> memref<1x128xf32, #tpu.memory_space<any>>
    %c6_i32_194 = arith.constant 6 : i32
    %c0_i32_195 = arith.constant 0 : i32
    %231 = tpu.memref_slice %arg10[%c6_i32_194, %c0_i32_195] : memref<8x128xf32, #tpu.memory_space<vmem>> -> memref<1x128xf32, #tpu.memory_space<vmem>>
    %232 = tpu.memref_slice %arg12[%c1_i32_191] : memref<3x!tpu.dma_semaphore, #tpu.memory_space<semaphore_mem>> -> memref<1x!tpu.dma_semaphore, #tpu.memory_space<semaphore_mem>>
    %233 = tpu.memref_squeeze %232 : memref<1x!tpu.dma_semaphore, #tpu.memory_space<semaphore_mem>> -> memref<!tpu.dma_semaphore, #tpu.memory_space<semaphore_mem>>
    tpu.wait_dma2 semaphore(%233 : memref<!tpu.dma_semaphore, #tpu.memory_space<semaphore_mem>>) src(%230 : memref<1x128xf32, #tpu.memory_space<any>>) dst(%231 : memref<1x128xf32, #tpu.memory_space<vmem>>)
    %c2_i32_196 = arith.constant 2 : i32
    %c0_i32_197 = arith.constant 0 : i32
    %c0_i32_198 = arith.constant 0 : i32
    %234 = tpu.memref_slice %arg4[%c0_i32_197, %c0_i32_198] : memref<32x128xf32, #tpu.memory_space<any>> -> memref<1x128xf32, #tpu.memory_space<any>>
    %c6_i32_199 = arith.constant 6 : i32
    %c0_i32_200 = arith.constant 0 : i32
    %235 = tpu.memref_slice %arg11[%c6_i32_199, %c0_i32_200] : memref<8x128xf32, #tpu.memory_space<vmem>> -> memref<1x128xf32, #tpu.memory_space<vmem>>
    %236 = tpu.memref_slice %arg12[%c2_i32_196] : memref<3x!tpu.dma_semaphore, #tpu.memory_space<semaphore_mem>> -> memref<1x!tpu.dma_semaphore, #tpu.memory_space<semaphore_mem>>
    %237 = tpu.memref_squeeze %236 : memref<1x!tpu.dma_semaphore, #tpu.memory_space<semaphore_mem>> -> memref<!tpu.dma_semaphore, #tpu.memory_space<semaphore_mem>>
    tpu.wait_dma2 semaphore(%237 : memref<!tpu.dma_semaphore, #tpu.memory_space<semaphore_mem>>) src(%234 : memref<1x128xf32, #tpu.memory_space<any>>) dst(%235 : memref<1x128xf32, #tpu.memory_space<vmem>>)
    %c0_i32_201 = arith.constant 0 : i32
    %c0_i32_202 = arith.constant 0 : i32
    %c0_i32_203 = arith.constant 0 : i32
    %238 = tpu.memref_slice %arg4[%c0_i32_202, %c0_i32_203] : memref<32x128xf32, #tpu.memory_space<any>> -> memref<1x128xf32, #tpu.memory_space<any>>
    %c7_i32_204 = arith.constant 7 : i32
    %c0_i32_205 = arith.constant 0 : i32
    %239 = tpu.memref_slice %arg9[%c7_i32_204, %c0_i32_205] : memref<8x128xf32, #tpu.memory_space<vmem>> -> memref<1x128xf32, #tpu.memory_space<vmem>>
    %240 = tpu.memref_slice %arg12[%c0_i32_201] : memref<3x!tpu.dma_semaphore, #tpu.memory_space<semaphore_mem>> -> memref<1x!tpu.dma_semaphore, #tpu.memory_space<semaphore_mem>>
    %241 = tpu.memref_squeeze %240 : memref<1x!tpu.dma_semaphore, #tpu.memory_space<semaphore_mem>> -> memref<!tpu.dma_semaphore, #tpu.memory_space<semaphore_mem>>
    tpu.wait_dma2 semaphore(%241 : memref<!tpu.dma_semaphore, #tpu.memory_space<semaphore_mem>>) src(%238 : memref<1x128xf32, #tpu.memory_space<any>>) dst(%239 : memref<1x128xf32, #tpu.memory_space<vmem>>)
    %c1_i32_206 = arith.constant 1 : i32
    %c0_i32_207 = arith.constant 0 : i32
    %c0_i32_208 = arith.constant 0 : i32
    %242 = tpu.memref_slice %arg5[%c0_i32_207, %c0_i32_208] : memref<16x128xf32, #tpu.memory_space<any>> -> memref<1x128xf32, #tpu.memory_space<any>>
    %c7_i32_209 = arith.constant 7 : i32
    %c0_i32_210 = arith.constant 0 : i32
    %243 = tpu.memref_slice %arg10[%c7_i32_209, %c0_i32_210] : memref<8x128xf32, #tpu.memory_space<vmem>> -> memref<1x128xf32, #tpu.memory_space<vmem>>
    %244 = tpu.memref_slice %arg12[%c1_i32_206] : memref<3x!tpu.dma_semaphore, #tpu.memory_space<semaphore_mem>> -> memref<1x!tpu.dma_semaphore, #tpu.memory_space<semaphore_mem>>
    %245 = tpu.memref_squeeze %244 : memref<1x!tpu.dma_semaphore, #tpu.memory_space<semaphore_mem>> -> memref<!tpu.dma_semaphore, #tpu.memory_space<semaphore_mem>>
    tpu.wait_dma2 semaphore(%245 : memref<!tpu.dma_semaphore, #tpu.memory_space<semaphore_mem>>) src(%242 : memref<1x128xf32, #tpu.memory_space<any>>) dst(%243 : memref<1x128xf32, #tpu.memory_space<vmem>>)
    %c2_i32_211 = arith.constant 2 : i32
    %c0_i32_212 = arith.constant 0 : i32
    %c0_i32_213 = arith.constant 0 : i32
    %246 = tpu.memref_slice %arg4[%c0_i32_212, %c0_i32_213] : memref<32x128xf32, #tpu.memory_space<any>> -> memref<1x128xf32, #tpu.memory_space<any>>
    %c7_i32_214 = arith.constant 7 : i32
    %c0_i32_215 = arith.constant 0 : i32
    %247 = tpu.memref_slice %arg11[%c7_i32_214, %c0_i32_215] : memref<8x128xf32, #tpu.memory_space<vmem>> -> memref<1x128xf32, #tpu.memory_space<vmem>>
    %248 = tpu.memref_slice %arg12[%c2_i32_211] : memref<3x!tpu.dma_semaphore, #tpu.memory_space<semaphore_mem>> -> memref<1x!tpu.dma_semaphore, #tpu.memory_space<semaphore_mem>>
    %249 = tpu.memref_squeeze %248 : memref<1x!tpu.dma_semaphore, #tpu.memory_space<semaphore_mem>> -> memref<!tpu.dma_semaphore, #tpu.memory_space<semaphore_mem>>
    tpu.wait_dma2 semaphore(%249 : memref<!tpu.dma_semaphore, #tpu.memory_space<semaphore_mem>>) src(%246 : memref<1x128xf32, #tpu.memory_space<any>>) dst(%247 : memref<1x128xf32, #tpu.memory_space<vmem>>)
    %c0 = arith.constant 0 : index
    %c0_216 = arith.constant 0 : index
    %250 = vector.load %arg9[%c0, %c0_216] : memref<8x128xf32, #tpu.memory_space<vmem>>, vector<8x128xf32>
    %c0_217 = arith.constant 0 : index
    %c0_218 = arith.constant 0 : index
    %251 = vector.load %arg6[%c0_217, %c0_218] : memref<8x128xf32, #tpu.memory_space<vmem>>, vector<8x128xf32>
    tpu.vector_store %arg6[%c0_217, %c0_218], %250 {strides = array<i32>} : memref<8x128xf32, #tpu.memory_space<vmem>>, vector<8x128xf32>,
    %c0_219 = arith.constant 0 : index
    %c0_220 = arith.constant 0 : index
    %252 = vector.load %arg10[%c0_219, %c0_220] : memref<8x128xf32, #tpu.memory_space<vmem>>, vector<8x128xf32>
    %c0_221 = arith.constant 0 : index
    %c0_222 = arith.constant 0 : index
    %253 = vector.load %arg7[%c0_221, %c0_222] : memref<8x128xf32, #tpu.memory_space<vmem>>, vector<8x128xf32>
    tpu.vector_store %arg7[%c0_221, %c0_222], %252 {strides = array<i32>} : memref<8x128xf32, #tpu.memory_space<vmem>>, vector<8x128xf32>,
    %c0_223 = arith.constant 0 : index
    %c0_224 = arith.constant 0 : index
    %254 = vector.load %arg11[%c0_223, %c0_224] : memref<8x128xf32, #tpu.memory_space<vmem>>, vector<8x128xf32>
    %c0_225 = arith.constant 0 : index
    %c0_226 = arith.constant 0 : index
    %255 = vector.load %arg8[%c0_225, %c0_226] : memref<8x128xf32, #tpu.memory_space<vmem>>, vector<8x128xf32>
    tpu.vector_store %arg8[%c0_225, %c0_226], %254 {strides = array<i32>} : memref<8x128xf32, #tpu.memory_space<vmem>>, vector<8x128xf32>,
    return
  }
  func.func @transform_2(%arg0: i32, %arg1: memref<16xi32, #tpu.memory_space<smem>>, %arg2: memref<16xi32, #tpu.memory_space<smem>>, %arg3: memref<16xi32, #tpu.memory_space<smem>>) -> (i32, i32) {
    %c0_i32 = arith.constant 0 : i32
    %c0_i32_0 = arith.constant 0 : i32
    return %arg0, %c0_i32 : i32, i32
  }
  func.func @transform_3(%arg0: i32, %arg1: memref<16xi32, #tpu.memory_space<smem>>, %arg2: memref<16xi32, #tpu.memory_space<smem>>, %arg3: memref<16xi32, #tpu.memory_space<smem>>) -> (i32, i32) {
    %c0_i32 = arith.constant 0 : i32
    %c0_i32_0 = arith.constant 0 : i32
    return %arg0, %c0_i32 : i32, i32
  }
  func.func @transform_4(%arg0: i32, %arg1: memref<16xi32, #tpu.memory_space<smem>>, %arg2: memref<16xi32, #tpu.memory_space<smem>>, %arg3: memref<16xi32, #tpu.memory_space<smem>>) -> (i32, i32) {
    %c0_i32 = arith.constant 0 : i32
    %c0_i32_0 = arith.constant 0 : i32
    return %arg0, %c0_i32 : i32, i32
  }
}

</mosaic_0001>

<llo_original>
// kernel: tpu_custom_call.1
$region0: #{tpu_custom_call.1}
  #allocation0 [shape = 'u32[]', space=smem, size = 0x4, offset = 0x4, fixed_abs, tag = 'smem constant byte address 0x4 - core index']
  #allocation1 [shape = 'u32[144,128]{1,0:T(1,128)}', space=vmem, size = 0x12000, scoped, tag = 'internal scratch']
  #allocation2 [shape = 'f32[8,128]{1,0:T(8,128)}', space=vmem, size = 0x1000, scoped, tag = 'scratch operand']
  #allocation3 [shape = 'f32[8,128]{1,0:T(8,128)}', space=vmem, size = 0x1000, scoped, tag = 'scratch operand']
  #allocation4 [shape = 'f32[8,128]{1,0:T(8,128)}', space=vmem, size = 0x1000, scoped, tag = 'scratch operand']
  #allocation5 [shape = 's32[3]{0}', space=sflag, size = 0xc, scoped, tag = 'scratch operand']
  #allocation6 [shape = 's32[1]{0}', space=sflag, size = 0x4, scoped, tag = 'scoped memory for tpu_custom_call.1']
  #allocation7 [shape = 'u8[512]{0}', space=smem, size = 0x200, scoped, tag = 'prefetched SMEM operand 0']
  #allocation8 [shape = 'u8[512]{0}', space=smem, size = 0x200, scoped, tag = 'prefetched SMEM operand 1']
  #allocation9 [shape = 'u8[512]{0}', space=smem, size = 0x200, scoped, tag = 'prefetched SMEM operand 2']
  #allocation15 [shape = 's32[]', space=sflag, size = 0x4, offset = 0, fixed_abs, tag = 'sflag constant byte address 0x0 - dummy sync flag']
  #allocation16 [shape = 's32[]', space=sflag, size = 0x4, offset = 0, fixed_abs, tag = 'sflag constant byte address 0x0 - dummy sync flag']
  #allocation17 [shape = 'u32[]', space=smem, size = 0x4, offset = 0x44, fixed_abs, tag = 'smem constant byte address 0x44 - assertion arg 0']
  #allocation18 [shape = 'u32[]', space=smem, size = 0x4, offset = 0x48, fixed_abs, tag = 'smem constant byte address 0x48 - assertion arg 1']
  #allocation19 [shape = 's32[]', space=sflag, size = 0x4, offset = 0, fixed_abs, tag = 'sflag constant byte address 0x0 - dummy sync flag']
  #allocation20 [shape = 's32[]', space=sflag, size = 0x4, offset = 0, fixed_abs, tag = 'sflag constant byte address 0x0 - dummy sync flag']
  #allocation21 [shape = 's32[]', space=sflag, size = 0x4, offset = 0, fixed_abs, tag = 'sflag constant byte address 0x0 - dummy sync flag']
  #allocation22 [shape = 's32[]', space=sflag, size = 0x4, offset = 0, fixed_abs, tag = 'sflag constant byte address 0x0 - dummy sync flag']
  #allocation23 [shape = 's32[]', space=sflag, size = 0x4, offset = 0, fixed_abs, tag = 'sflag constant byte address 0x0 - dummy sync flag']
  #allocation24 [shape = 's32[]', space=sflag, size = 0x4, offset = 0, fixed_abs, tag = 'sflag constant byte address 0x0 - dummy sync flag']
  #allocation25 [shape = 's32[]', space=sflag, size = 0x4, offset = 0, fixed_abs, tag = 'sflag constant byte address 0x0 - dummy sync flag']
  #allocation26 [shape = 's32[]', space=sflag, size = 0x4, offset = 0, fixed_abs, tag = 'sflag constant byte address 0x0 - dummy sync flag']
  #allocation27 [shape = 's32[]', space=sflag, size = 0x4, offset = 0, fixed_abs, tag = 'sflag constant byte address 0x0 - dummy sync flag']
  #allocation28 [shape = 's32[]', space=sflag, size = 0x4, offset = 0, fixed_abs, tag = 'sflag constant byte address 0x0 - dummy sync flag']
  #allocation29 [shape = 's32[]', space=sflag, size = 0x4, offset = 0, fixed_abs, tag = 'sflag constant byte address 0x0 - dummy sync flag']
  #allocation30 [shape = 's32[]', space=sflag, size = 0x4, offset = 0, fixed_abs, tag = 'sflag constant byte address 0x0 - dummy sync flag']
  #allocation31 [shape = 's32[]', space=sflag, size = 0x4, offset = 0, fixed_abs, tag = 'sflag constant byte address 0x0 - dummy sync flag']
  #allocation32 [shape = 's32[]', space=sflag, size = 0x4, offset = 0, fixed_abs, tag = 'sflag constant byte address 0x0 - dummy sync flag']
  #allocation33 [shape = 's32[]', space=sflag, size = 0x4, offset = 0, fixed_abs, tag = 'sflag constant byte address 0x0 - dummy sync flag']
  #allocation34 [shape = 's32[]', space=sflag, size = 0x4, offset = 0, fixed_abs, tag = 'sflag constant byte address 0x0 - dummy sync flag']
  #allocation35 [shape = 's32[]', space=sflag, size = 0x4, offset = 0, fixed_abs, tag = 'sflag constant byte address 0x0 - dummy sync flag']
  #allocation36 [shape = 's32[]', space=sflag, size = 0x4, offset = 0, fixed_abs, tag = 'sflag constant byte address 0x0 - dummy sync flag']
  #allocation37 [shape = 's32[]', space=sflag, size = 0x4, offset = 0, fixed_abs, tag = 'sflag constant byte address 0x0 - dummy sync flag']
  #allocation38 [shape = 's32[]', space=sflag, size = 0x4, offset = 0, fixed_abs, tag = 'sflag constant byte address 0x0 - dummy sync flag']
  #allocation39 [shape = 's32[]', space=sflag, size = 0x4, offset = 0, fixed_abs, tag = 'sflag constant byte address 0x0 - dummy sync flag']
  #allocation40 [shape = 's32[]', space=sflag, size = 0x4, offset = 0, fixed_abs, tag = 'sflag constant byte address 0x0 - dummy sync flag']
  #allocation41 [shape = 's32[]', space=sflag, size = 0x4, offset = 0, fixed_abs, tag = 'sflag constant byte address 0x0 - dummy sync flag']
  #allocation42 [shape = 's32[]', space=sflag, size = 0x4, offset = 0, fixed_abs, tag = 'sflag constant byte address 0x0 - dummy sync flag']
  #allocation43 [shape = 's32[]', space=sflag, size = 0x4, offset = 0, fixed_abs, tag = 'sflag constant byte address 0x0 - dummy sync flag']
  #allocation44 [shape = 's32[]', space=sflag, size = 0x4, offset = 0, fixed_abs, tag = 'sflag constant byte address 0x0 - dummy sync flag']
  #allocation45 [shape = 's32[]', space=sflag, size = 0x4, offset = 0, fixed_abs, tag = 'sflag constant byte address 0x0 - dummy sync flag']
  #allocation46 [shape = 's32[]', space=sflag, size = 0x4, offset = 0, fixed_abs, tag = 'sflag constant byte address 0x0 - dummy sync flag']
  #allocation47 [shape = 's32[]', space=sflag, size = 0x4, offset = 0, fixed_abs, tag = 'sflag constant byte address 0x0 - dummy sync flag']
  #allocation48 [shape = 's32[]', space=sflag, size = 0x4, offset = 0, fixed_abs, tag = 'sflag constant byte address 0x0 - dummy sync flag']
  #allocation49 [shape = 's32[]', space=sflag, size = 0x4, offset = 0, fixed_abs, tag = 'sflag constant byte address 0x0 - dummy sync flag']
  #allocation50 [shape = 's32[]', space=sflag, size = 0x4, offset = 0, fixed_abs, tag = 'sflag constant byte address 0x0 - dummy sync flag']
  #allocation51 [shape = 's32[]', space=sflag, size = 0x4, offset = 0, fixed_abs, tag = 'sflag constant byte address 0x0 - dummy sync flag']
  #allocation52 [shape = 's32[]', space=sflag, size = 0x4, offset = 0, fixed_abs, tag = 'sflag constant byte address 0x0 - dummy sync flag']
  #allocation53 [shape = 's32[]', space=sflag, size = 0x4, offset = 0, fixed_abs, tag = 'sflag constant byte address 0x0 - dummy sync flag']
  #allocation54 [shape = 's32[]', space=sflag, size = 0x4, offset = 0, fixed_abs, tag = 'sflag constant byte address 0x0 - dummy sync flag']
  #allocation55 [shape = 's32[]', space=sflag, size = 0x4, offset = 0, fixed_abs, tag = 'sflag constant byte address 0x0 - dummy sync flag']
  #allocation56 [shape = 's32[]', space=sflag, size = 0x4, offset = 0, fixed_abs, tag = 'sflag constant byte address 0x0 - dummy sync flag']
  #allocation57 [shape = 's32[]', space=sflag, size = 0x4, offset = 0, fixed_abs, tag = 'sflag constant byte address 0x0 - dummy sync flag']
  #allocation58 [shape = 's32[]', space=sflag, size = 0x4, offset = 0, fixed_abs, tag = 'sflag constant byte address 0x0 - dummy sync flag']
  #allocation59 [shape = 's32[]', space=sflag, size = 0x4, offset = 0, fixed_abs, tag = 'sflag constant byte address 0x0 - dummy sync flag']
  #allocation60 [shape = 's32[]', space=sflag, size = 0x4, offset = 0, fixed_abs, tag = 'sflag constant byte address 0x0 - dummy sync flag']
  #allocation61 [shape = 's32[]', space=sflag, size = 0x4, offset = 0, fixed_abs, tag = 'sflag constant byte address 0x0 - dummy sync flag']
  #allocation62 [shape = 's32[]', space=sflag, size = 0x4, offset = 0, fixed_abs, tag = 'sflag constant byte address 0x0 - dummy sync flag']
  #allocation63 [shape = 's32[]', space=sflag, size = 0x4, offset = 0, fixed_abs, tag = 'sflag constant byte address 0x0 - dummy sync flag']
  #allocation64 [shape = 's32[]', space=sflag, size = 0x4, offset = 0, fixed_abs, tag = 'sflag constant byte address 0x0 - dummy sync flag']
  %s0 = inlined_call_operand.hbm [shape: s32[16], index: 0, kind: input, shape index: {}]
  %s1 = inlined_call_operand.vmem [shape: s32[16], index: 1, kind: input, shape index: {}]
  %s2 = inlined_call_operand.vmem [shape: s32[16], index: 2, kind: input, shape index: {}]
  %s3 = inlined_call_operand.hbm [shape: f32[32,128], index: 3, kind: input, shape index: {}]
  %s4 = inlined_call_operand.hbm [shape: f32[16,128], index: 4, kind: input, shape index: {}]
  %s5 = inlined_call_operand.hbm [shape: f32[16,128], index: 5, kind: output, shape index: {0}]
  %s6 = inlined_call_operand.hbm [shape: f32[16,128], index: 6, kind: output, shape index: {1}]
  %s7 = inlined_call_operand.hbm [shape: f32[16,128], index: 7, kind: output, shape index: {2}]
  %8 = xla_tuple %s5, %s6, %s7
  %s9 = sld [smem:[#allocation0]]
  $region137: #{tpu_custom_call.1} parent=0
    _
  %s11 = ssub.s32 1, %s9
  %s12 = scalar_select 0, %s11, %s9
  %14 = dma.hbm_to_smem %s0, 16, [#allocation7], [#allocation6]
  %s15 = sshll.u32 %s1, 4
  %s16 = int_to_ptr.vmem [resolvable:$true] %s15
  %18 = dma.vmem_to_smem %s16, 16, [#allocation8], [#allocation6]
  %s19 = sshll.u32 %s2, 4
  %s20 = int_to_ptr.vmem [resolvable:$true] %s19
  %22 = dma.vmem_to_smem %s20, 16, [#allocation9], [#allocation6]
  %23 = dma.done [#allocation6], 48
  %24 = sfence
  $region1: #{tpu_custom_call.1} parent=0
    #allocation10 [shape = 'u8[8192]{0}', space=vmem, size = 0x2000, scoped, tag = 'output window, operand 0']
    #allocation11 [shape = 's32[2]{0}', space=sflag, size = 0x8, scoped, tag = 'scoped memory for tpu_custom_call.1']
    #allocation12 [shape = 'u8[8192]{0}', space=vmem, size = 0x2000, scoped, tag = 'output window, operand 1']
    #allocation13 [shape = 's32[2]{0}', space=sflag, size = 0x8, scoped, tag = 'scoped memory for tpu_custom_call.1']
    #allocation14 [shape = 'u8[8192]{0}', space=vmem, size = 0x2000, scoped, tag = 'output window, operand 2']
    %25 = vsyncpa [#allocation11], 0
    %s26 = scalar_lea.sflag [#allocation11], 1
    %27 = vsyncpa %s26, 0
    %28 = vsyncpa [#allocation13], 0
    %s29 = scalar_lea.sflag [#allocation13], 1
    %30 = vsyncpa %s29, 0
    loop: start=0, step=1, limit=3
    $region2: #{tpu_custom_call.1} parent=1 // loop_pre_header
      _
    $region3: #{tpu_custom_call.1} parent=1 // loop_header
      %s32 = sphi 0, %s36
      %p33 = scmp.ge.s32.totalorder %s32, 3
      %s41 = sphi 0, %s43
      %s44 = sphi 0, %s41
      %s54 = sphi 0, %s44
      %s60 = sphi 0, %s62
      %s63 = sphi 0, %s60
      %s73 = sphi 0, %s63
      %s79 = sphi 0, %s81
      %s82 = sphi 0, %s79
      %s92 = sphi 0, %s82
    $region4: #{tpu_custom_call.1} parent=1 // loop_header_branch
      %35 = sbr.rel (%p33) target = $region8
    $region5: #{tpu_custom_call.1} parent=1 // loop_body
      %s37 = ssub.s32 %s32, 1
      %s38 = sadd.s32 %s32, 1
      %s39 = ssub.s32 %s32, %s38
      %p40 = scmp.eq.s32.totalorder %s39, 0
      %s42 = sadd.s32 %s41, 1
      %s43 = scalar_select %p40, %s41, %s42
      %p45 = pneg %p40
      %p46 = scmp.eq.s32.totalorder %s32, 1
      %p47 = por %p45, %p46
      %p48 = scmp.ne.s32.totalorder %s41, %s44
      %p49 = scmp.eq.s32.totalorder %s32, 0
      %p50 = por %p48, %p49
      %p51 = scmp.ne.s32.totalorder %s41, %s44
      %p52 = scmp.eq.s32.totalorder %s37, 1
      %p53 = por %p51, %p52
      %p55 = scmp.ne.s32.totalorder %s44, %s54
      %p56 = scmp.eq.s32.totalorder %s37, 0
      %p57 = por %p55, %p56
      %s58 = ssub.s32 %s32, %s38
      %p59 = scmp.eq.s32.totalorder %s58, 0
      %s61 = sadd.s32 %s60, 1
      %s62 = scalar_select %p59, %s60, %s61
      %p64 = pneg %p59
      %p65 = scmp.eq.s32.totalorder %s32, 1
      %p66 = por %p64, %p65
      %p67 = scmp.ne.s32.totalorder %s60, %s63
      %p68 = scmp.eq.s32.totalorder %s32, 0
      %p69 = por %p67, %p68
      %p70 = scmp.ne.s32.totalorder %s60, %s63
      %p71 = scmp.eq.s32.totalorder %s37, 1
      %p72 = por %p70, %p71
      %p74 = scmp.ne.s32.totalorder %s63, %s73
      %p75 = scmp.eq.s32.totalorder %s37, 0
      %p76 = por %p74, %p75
      %s77 = ssub.s32 %s32, %s38
      %p78 = scmp.eq.s32.totalorder %s77, 0
      %s80 = sadd.s32 %s79, 1
      %s81 = scalar_select %p78, %s79, %s80
      %p83 = pneg %p78
      %p84 = scmp.eq.s32.totalorder %s32, 1
      %p85 = por %p83, %p84
      %p86 = scmp.ne.s32.totalorder %s79, %s82
      %p87 = scmp.eq.s32.totalorder %s32, 0
      %p88 = por %p86, %p87
      %p89 = scmp.ne.s32.totalorder %s79, %s82
      %p90 = scmp.eq.s32.totalorder %s37, 1
      %p91 = por %p89, %p90
      %p93 = scmp.ne.s32.totalorder %s82, %s92
      %p94 = scmp.eq.s32.totalorder %s37, 0
      %p95 = por %p93, %p94
      %p96 = scmp.lt.s32.totalorder %s32, 2
      // Predicated region
      $region9: #{tpu_custom_call.1} parent=5 // pred_check
        %p97 = pneg %p96
      $region10: #{tpu_custom_call.1} parent=5 // pred_check_branch
        %99 = sbr.rel (%p97) target = $region12
      $region11: #{tpu_custom_call.1} parent=5 // pred_region
        %p100 = pneg %p50
        %p101 = pneg %p47
        %s102 = sand.u32 %s41, 1
        %s103 = scalar_lea.sflag [#allocation11], %s102
        %s104 = sand.u32 %s41, 1
        %s105 = smul.addr %s104, 8
        %s106 = scalar_lea.vmem [#allocation10], %s105
        %p107 = pneg %p69
        %p108 = pneg %p66
        %s109 = sand.u32 %s32, 1
        %s110 = scalar_lea.sflag [#allocation13], %s109
        %s111 = sand.u32 %s60, 1
        %s112 = smul.addr %s111, 8
        %s113 = scalar_lea.vmem [#allocation12], %s112
        %p114 = pneg %p88
        %p115 = pneg %p85
        %s116 = sand.u32 %s32, 1
        %s117 = scalar_lea.sflag [#allocation13], %s116
        %s118 = sand.u32 %s79, 1
        %s119 = smul.addr %s118, 8
        %s120 = scalar_lea.vmem [#allocation14], %s119
        %s121 = smul.u32 %s32, 8
        %s122 = sld [smem:[#allocation7 + %s121]]
        %s123 = sld [smem:[#allocation8 + %s121]]
        %s124 = sld [smem:[#allocation9 + %s121]]
        %s125 = smul.addr %s122, 16
        %s126 = scalar_lea.hbm %s3, %s125
        // Predicated region
        $region13: #{tpu_custom_call.1} parent=11 // pred_check
          _
        $region14: #{tpu_custom_call.1} parent=11 // pred_check_branch
          %128 = sbr.rel target = $region16
        $region15: #{tpu_custom_call.1} parent=11 // pred_region
          %129 = sst [smem:[#allocation17]] [#allocation16]
          %130 = sst [smem:[#allocation18]] [#allocation15]
        $region16: #{tpu_custom_call.1} parent=11 // pred_fallthru
          _
        %132 = shalt.err (0)
        %s134 = sshll.u32 [#allocation2], 4
        %s135 = int_to_ptr.vmem [resolvable:$true] %s134
        %137 = dma.hbm_to_vmem [thread:$0]  %s126, 16, %s135, [#allocation5]
        %s138 = smul.addr %s123, 16
        %s139 = scalar_lea.hbm %s4, %s138
        %s140 = scalar_lea.sflag [#allocation5], 1
        // Predicated region
        $region17: #{tpu_custom_call.1} parent=11 // pred_check
          _
        $region18: #{tpu_custom_call.1} parent=11 // pred_check_branch
          %142 = sbr.rel target = $region20
        $region19: #{tpu_custom_call.1} parent=11 // pred_region
          %143 = sst [smem:[#allocation17]] [#allocation20]
          %144 = sst [smem:[#allocation18]] [#allocation19]
        $region20: #{tpu_custom_call.1} parent=11 // pred_fallthru
          _
        %146 = shalt.err (0)
        %s148 = sshll.u32 [#allocation3], 4
        %s149 = int_to_ptr.vmem [resolvable:$true] %s148
        %151 = dma.hbm_to_vmem [thread:$0]  %s139, 16, %s149, %s140
        %s152 = smul.addr %s124, 16
        %s153 = scalar_lea.hbm %s3, %s152
        %s154 = scalar_lea.sflag [#allocation5], 2
        // Predicated region
        $region21: #{tpu_custom_call.1} parent=11 // pred_check
          _
        $region22: #{tpu_custom_call.1} parent=11 // pred_check_branch
          %156 = sbr.rel target = $region24
        $region23: #{tpu_custom_call.1} parent=11 // pred_region
          %157 = sst [smem:[#allocation17]] [#allocation22]
          %158 = sst [smem:[#allocation18]] [#allocation21]
        $region24: #{tpu_custom_call.1} parent=11 // pred_fallthru
          _
        %160 = shalt.err (0)
        %s162 = sshll.u32 [#allocation4], 4
        %s163 = int_to_ptr.vmem [resolvable:$true] %s162
        %165 = dma.hbm_to_vmem [thread:$0]  %s153, 16, %s163, %s154
        %s166 = sadd.s32 %s121, 1
        %s167 = sld [smem:[#allocation7 + %s166]]
        %s168 = sld [smem:[#allocation8 + %s166]]
        %s169 = sld [smem:[#allocation9 + %s166]]
        %s170 = smul.addr %s167, 16
        %s171 = scalar_lea.hbm %s3, %s170
        %s172 = scalar_lea.vmem [#allocation2], 1
        // Predicated region
        $region25: #{tpu_custom_call.1} parent=11 // pred_check
          _
        $region26: #{tpu_custom_call.1} parent=11 // pred_check_branch
          %174 = sbr.rel target = $region28
        $region27: #{tpu_custom_call.1} parent=11 // pred_region
          %175 = sst [smem:[#allocation17]] [#allocation24]
          %176 = sst [smem:[#allocation18]] [#allocation23]
        $region28: #{tpu_custom_call.1} parent=11 // pred_fallthru
          _
        %178 = shalt.err (0)
        %s180 = sshll.u32 %s172, 4
        %s181 = int_to_ptr.vmem [resolvable:$true] %s180
        %183 = dma.hbm_to_vmem [thread:$0]  %s171, 16, %s181, [#allocation5]
        %s184 = smul.addr %s168, 16
        %s185 = scalar_lea.hbm %s4, %s184
        %s186 = scalar_lea.vmem [#allocation3], 1
        // Predicated region
        $region29: #{tpu_custom_call.1} parent=11 // pred_check
          _
        $region30: #{tpu_custom_call.1} parent=11 // pred_check_branch
          %188 = sbr.rel target = $region32
        $region31: #{tpu_custom_call.1} parent=11 // pred_region
          %189 = sst [smem:[#allocation17]] [#allocation26]
          %190 = sst [smem:[#allocation18]] [#allocation25]
        $region32: #{tpu_custom_call.1} parent=11 // pred_fallthru
          _
        %192 = shalt.err (0)
        %s194 = sshll.u32 %s186, 4
        %s195 = int_to_ptr.vmem [resolvable:$true] %s194
        %197 = dma.hbm_to_vmem [thread:$0]  %s185, 16, %s195, %s140
        %s198 = smul.addr %s169, 16
        %s199 = scalar_lea.hbm %s3, %s198
        %s200 = scalar_lea.vmem [#allocation4], 1
        // Predicated region
        $region33: #{tpu_custom_call.1} parent=11 // pred_check
          _
        $region34: #{tpu_custom_call.1} parent=11 // pred_check_branch
          %202 = sbr.rel target = $region36
        $region35: #{tpu_custom_call.1} parent=11 // pred_region
          %203 = sst [smem:[#allocation17]] [#allocation28]
          %204 = sst [smem:[#allocation18]] [#allocation27]
        $region36: #{tpu_custom_call.1} parent=11 // pred_fallthru
          _
        %206 = shalt.err (0)
        %s208 = sshll.u32 %s200, 4
        %s209 = int_to_ptr.vmem [resolvable:$true] %s208
        %211 = dma.hbm_to_vmem [thread:$0]  %s199, 16, %s209, %s154
        %s212 = sadd.s32 %s121, 2
        %s213 = sld [smem:[#allocation7 + %s212]]
        %s214 = sld [smem:[#allocation8 + %s212]]
        %s215 = sld [smem:[#allocation9 + %s212]]
        %s216 = smul.addr %s213, 16
        %s217 = scalar_lea.hbm %s3, %s216
        %s218 = scalar_lea.vmem [#allocation2], 2
        // Predicated region
        $region37: #{tpu_custom_call.1} parent=11 // pred_check
          _
        $region38: #{tpu_custom_call.1} parent=11 // pred_check_branch
          %220 = sbr.rel target = $region40
        $region39: #{tpu_custom_call.1} parent=11 // pred_region
          %221 = sst [smem:[#allocation17]] [#allocation30]
          %222 = sst [smem:[#allocation18]] [#allocation29]
        $region40: #{tpu_custom_call.1} parent=11 // pred_fallthru
          _
        %224 = shalt.err (0)
        %s226 = sshll.u32 %s218, 4
        %s227 = int_to_ptr.vmem [resolvable:$true] %s226
        %229 = dma.hbm_to_vmem [thread:$0]  %s217, 16, %s227, [#allocation5]
        %s230 = smul.addr %s214, 16
        %s231 = scalar_lea.hbm %s4, %s230
        %s232 = scalar_lea.vmem [#allocation3], 2
        // Predicated region
        $region41: #{tpu_custom_call.1} parent=11 // pred_check
          _
        $region42: #{tpu_custom_call.1} parent=11 // pred_check_branch
          %234 = sbr.rel target = $region44
        $region43: #{tpu_custom_call.1} parent=11 // pred_region
          %235 = sst [smem:[#allocation17]] [#allocation32]
          %236 = sst [smem:[#allocation18]] [#allocation31]
        $region44: #{tpu_custom_call.1} parent=11 // pred_fallthru
          _
        %238 = shalt.err (0)
        %s240 = sshll.u32 %s232, 4
        %s241 = int_to_ptr.vmem [resolvable:$true] %s240
        %243 = dma.hbm_to_vmem [thread:$0]  %s231, 16, %s241, %s140
        %s244 = smul.addr %s215, 16
        %s245 = scalar_lea.hbm %s3, %s244
        %s246 = scalar_lea.vmem [#allocation4], 2
        // Predicated region
        $region45: #{tpu_custom_call.1} parent=11 // pred_check
          _
        $region46: #{tpu_custom_call.1} parent=11 // pred_check_branch
          %248 = sbr.rel target = $region48
        $region47: #{tpu_custom_call.1} parent=11 // pred_region
          %249 = sst [smem:[#allocation17]] [#allocation34]
          %250 = sst [smem:[#allocation18]] [#allocation33]
        $region48: #{tpu_custom_call.1} parent=11 // pred_fallthru
          _
        %252 = shalt.err (0)
        %s254 = sshll.u32 %s246, 4
        %s255 = int_to_ptr.vmem [resolvable:$true] %s254
        %257 = dma.hbm_to_vmem [thread:$0]  %s245, 16, %s255, %s154
        %s258 = sadd.s32 %s121, 3
        %s259 = sld [smem:[#allocation7 + %s258]]
        %s260 = sld [smem:[#allocation8 + %s258]]
        %s261 = sld [smem:[#allocation9 + %s258]]
        %s262 = smul.addr %s259, 16
        %s263 = scalar_lea.hbm %s3, %s262
        %s264 = scalar_lea.vmem [#allocation2], 3
        // Predicated region
        $region49: #{tpu_custom_call.1} parent=11 // pred_check
          _
        $region50: #{tpu_custom_call.1} parent=11 // pred_check_branch
          %266 = sbr.rel target = $region52
        $region51: #{tpu_custom_call.1} parent=11 // pred_region
          %267 = sst [smem:[#allocation17]] [#allocation36]
          %268 = sst [smem:[#allocation18]] [#allocation35]
        $region52: #{tpu_custom_call.1} parent=11 // pred_fallthru
          _
        %270 = shalt.err (0)
        %s272 = sshll.u32 %s264, 4
        %s273 = int_to_ptr.vmem [resolvable:$true] %s272
        %275 = dma.hbm_to_vmem [thread:$0]  %s263, 16, %s273, [#allocation5]
        %s276 = smul.addr %s260, 16
        %s277 = scalar_lea.hbm %s4, %s276
        %s278 = scalar_lea.vmem [#allocation3], 3
        // Predicated region
        $region53: #{tpu_custom_call.1} parent=11 // pred_check
          _
        $region54: #{tpu_custom_call.1} parent=11 // pred_check_branch
          %280 = sbr.rel target = $region56
        $region55: #{tpu_custom_call.1} parent=11 // pred_region
          %281 = sst [smem:[#allocation17]] [#allocation38]
          %282 = sst [smem:[#allocation18]] [#allocation37]
        $region56: #{tpu_custom_call.1} parent=11 // pred_fallthru
          _
        %284 = shalt.err (0)
        %s286 = sshll.u32 %s278, 4
        %s287 = int_to_ptr.vmem [resolvable:$true] %s286
        %289 = dma.hbm_to_vmem [thread:$0]  %s277, 16, %s287, %s140
        %s290 = smul.addr %s261, 16
        %s291 = scalar_lea.hbm %s3, %s290
        %s292 = scalar_lea.vmem [#allocation4], 3
        // Predicated region
        $region57: #{tpu_custom_call.1} parent=11 // pred_check
          _
        $region58: #{tpu_custom_call.1} parent=11 // pred_check_branch
          %294 = sbr.rel target = $region60
        $region59: #{tpu_custom_call.1} parent=11 // pred_region
          %295 = sst [smem:[#allocation17]] [#allocation40]
          %296 = sst [smem:[#allocation18]] [#allocation39]
        $region60: #{tpu_custom_call.1} parent=11 // pred_fallthru
          _
        %298 = shalt.err (0)
        %s300 = sshll.u32 %s292, 4
        %s301 = int_to_ptr.vmem [resolvable:$true] %s300
        %303 = dma.hbm_to_vmem [thread:$0]  %s291, 16, %s301, %s154
        %s304 = sadd.s32 %s121, 4
        %s305 = sld [smem:[#allocation7 + %s304]]
        %s306 = sld [smem:[#allocation8 + %s304]]
        %s307 = sld [smem:[#allocation9 + %s304]]
        %s308 = smul.addr %s305, 16
        %s309 = scalar_lea.hbm %s3, %s308
        %s310 = scalar_lea.vmem [#allocation2], 4
        // Predicated region
        $region61: #{tpu_custom_call.1} parent=11 // pred_check
          _
        $region62: #{tpu_custom_call.1} parent=11 // pred_check_branch
          %312 = sbr.rel target = $region64
        $region63: #{tpu_custom_call.1} parent=11 // pred_region
          %313 = sst [smem:[#allocation17]] [#allocation42]
          %314 = sst [smem:[#allocation18]] [#allocation41]
        $region64: #{tpu_custom_call.1} parent=11 // pred_fallthru
          _
        %316 = shalt.err (0)
        %s318 = sshll.u32 %s310, 4
        %s319 = int_to_ptr.vmem [resolvable:$true] %s318
        %321 = dma.hbm_to_vmem [thread:$0]  %s309, 16, %s319, [#allocation5]
        %s322 = smul.addr %s306, 16
        %s323 = scalar_lea.hbm %s4, %s322
        %s324 = scalar_lea.vmem [#allocation3], 4
        // Predicated region
        $region65: #{tpu_custom_call.1} parent=11 // pred_check
          _
        $region66: #{tpu_custom_call.1} parent=11 // pred_check_branch
          %326 = sbr.rel target = $region68
        $region67: #{tpu_custom_call.1} parent=11 // pred_region
          %327 = sst [smem:[#allocation17]] [#allocation44]
          %328 = sst [smem:[#allocation18]] [#allocation43]
        $region68: #{tpu_custom_call.1} parent=11 // pred_fallthru
          _
        %330 = shalt.err (0)
        %s332 = sshll.u32 %s324, 4
        %s333 = int_to_ptr.vmem [resolvable:$true] %s332
        %335 = dma.hbm_to_vmem [thread:$0]  %s323, 16, %s333, %s140
        %s336 = smul.addr %s307, 16
        %s337 = scalar_lea.hbm %s3, %s336
        %s338 = scalar_lea.vmem [#allocation4], 4
        // Predicated region
        $region69: #{tpu_custom_call.1} parent=11 // pred_check
          _
        $region70: #{tpu_custom_call.1} parent=11 // pred_check_branch
          %340 = sbr.rel target = $region72
        $region71: #{tpu_custom_call.1} parent=11 // pred_region
          %341 = sst [smem:[#allocation17]] [#allocation46]
          %342 = sst [smem:[#allocation18]] [#allocation45]
        $region72: #{tpu_custom_call.1} parent=11 // pred_fallthru
          _
        %344 = shalt.err (0)
        %s346 = sshll.u32 %s338, 4
        %s347 = int_to_ptr.vmem [resolvable:$true] %s346
        %349 = dma.hbm_to_vmem [thread:$0]  %s337, 16, %s347, %s154
        %s350 = sadd.s32 %s121, 5
        %s351 = sld [smem:[#allocation7 + %s350]]
        %s352 = sld [smem:[#allocation8 + %s350]]
        %s353 = sld [smem:[#allocation9 + %s350]]
        %s354 = smul.addr %s351, 16
        %s355 = scalar_lea.hbm %s3, %s354
        %s356 = scalar_lea.vmem [#allocation2], 5
        // Predicated region
        $region73: #{tpu_custom_call.1} parent=11 // pred_check
          _
        $region74: #{tpu_custom_call.1} parent=11 // pred_check_branch
          %358 = sbr.rel target = $region76
        $region75: #{tpu_custom_call.1} parent=11 // pred_region
          %359 = sst [smem:[#allocation17]] [#allocation48]
          %360 = sst [smem:[#allocation18]] [#allocation47]
        $region76: #{tpu_custom_call.1} parent=11 // pred_fallthru
          _
        %362 = shalt.err (0)
        %s364 = sshll.u32 %s356, 4
        %s365 = int_to_ptr.vmem [resolvable:$true] %s364
        %367 = dma.hbm_to_vmem [thread:$0]  %s355, 16, %s365, [#allocation5]
        %s368 = smul.addr %s352, 16
        %s369 = scalar_lea.hbm %s4, %s368
        %s370 = scalar_lea.vmem [#allocation3], 5
        // Predicated region
        $region77: #{tpu_custom_call.1} parent=11 // pred_check
          _
        $region78: #{tpu_custom_call.1} parent=11 // pred_check_branch
          %372 = sbr.rel target = $region80
        $region79: #{tpu_custom_call.1} parent=11 // pred_region
          %373 = sst [smem:[#allocation17]] [#allocation50]
          %374 = sst [smem:[#allocation18]] [#allocation49]
        $region80: #{tpu_custom_call.1} parent=11 // pred_fallthru
          _
        %376 = shalt.err (0)
        %s378 = sshll.u32 %s370, 4
        %s379 = int_to_ptr.vmem [resolvable:$true] %s378
        %381 = dma.hbm_to_vmem [thread:$0]  %s369, 16, %s379, %s140
        %s382 = smul.addr %s353, 16
        %s383 = scalar_lea.hbm %s3, %s382
        %s384 = scalar_lea.vmem [#allocation4], 5
        // Predicated region
        $region81: #{tpu_custom_call.1} parent=11 // pred_check
          _
        $region82: #{tpu_custom_call.1} parent=11 // pred_check_branch
          %386 = sbr.rel target = $region84
        $region83: #{tpu_custom_call.1} parent=11 // pred_region
          %387 = sst [smem:[#allocation17]] [#allocation52]
          %388 = sst [smem:[#allocation18]] [#allocation51]
        $region84: #{tpu_custom_call.1} parent=11 // pred_fallthru
          _
        %390 = shalt.err (0)
        %s392 = sshll.u32 %s384, 4
        %s393 = int_to_ptr.vmem [resolvable:$true] %s392
        %395 = dma.hbm_to_vmem [thread:$0]  %s383, 16, %s393, %s154
        %s396 = sadd.s32 %s121, 6
        %s397 = sld [smem:[#allocation7 + %s396]]
        %s398 = sld [smem:[#allocation8 + %s396]]
        %s399 = sld [smem:[#allocation9 + %s396]]
        %s400 = smul.addr %s397, 16
        %s401 = scalar_lea.hbm %s3, %s400
        %s402 = scalar_lea.vmem [#allocation2], 6
        // Predicated region
        $region85: #{tpu_custom_call.1} parent=11 // pred_check
          _
        $region86: #{tpu_custom_call.1} parent=11 // pred_check_branch
          %404 = sbr.rel target = $region88
        $region87: #{tpu_custom_call.1} parent=11 // pred_region
          %405 = sst [smem:[#allocation17]] [#allocation54]
          %406 = sst [smem:[#allocation18]] [#allocation53]
        $region88: #{tpu_custom_call.1} parent=11 // pred_fallthru
          _
        %408 = shalt.err (0)
        %s410 = sshll.u32 %s402, 4
        %s411 = int_to_ptr.vmem [resolvable:$true] %s410
        %413 = dma.hbm_to_vmem [thread:$0]  %s401, 16, %s411, [#allocation5]
        %s414 = smul.addr %s398, 16
        %s415 = scalar_lea.hbm %s4, %s414
        %s416 = scalar_lea.vmem [#allocation3], 6
        // Predicated region
        $region89: #{tpu_custom_call.1} parent=11 // pred_check
          _
        $region90: #{tpu_custom_call.1} parent=11 // pred_check_branch
          %418 = sbr.rel target = $region92
        $region91: #{tpu_custom_call.1} parent=11 // pred_region
          %419 = sst [smem:[#allocation17]] [#allocation56]
          %420 = sst [smem:[#allocation18]] [#allocation55]
        $region92: #{tpu_custom_call.1} parent=11 // pred_fallthru
          _
        %422 = shalt.err (0)
        %s424 = sshll.u32 %s416, 4
        %s425 = int_to_ptr.vmem [resolvable:$true] %s424
        %427 = dma.hbm_to_vmem [thread:$0]  %s415, 16, %s425, %s140
        %s428 = smul.addr %s399, 16
        %s429 = scalar_lea.hbm %s3, %s428
        %s430 = scalar_lea.vmem [#allocation4], 6
        // Predicated region
        $region93: #{tpu_custom_call.1} parent=11 // pred_check
          _
        $region94: #{tpu_custom_call.1} parent=11 // pred_check_branch
          %432 = sbr.rel target = $region96
        $region95: #{tpu_custom_call.1} parent=11 // pred_region
          %433 = sst [smem:[#allocation17]] [#allocation58]
          %434 = sst [smem:[#allocation18]] [#allocation57]
        $region96: #{tpu_custom_call.1} parent=11 // pred_fallthru
          _
        %436 = shalt.err (0)
        %s438 = sshll.u32 %s430, 4
        %s439 = int_to_ptr.vmem [resolvable:$true] %s438
        %441 = dma.hbm_to_vmem [thread:$0]  %s429, 16, %s439, %s154
        %s442 = sadd.s32 %s121, 7
        %s443 = sld [smem:[#allocation7 + %s442]]
        %s444 = sld [smem:[#allocation8 + %s442]]
        %s445 = sld [smem:[#allocation9 + %s442]]
        %s446 = smul.addr %s443, 16
        %s447 = scalar_lea.hbm %s3, %s446
        %s448 = scalar_lea.vmem [#allocation2], 7
        // Predicated region
        $region97: #{tpu_custom_call.1} parent=11 // pred_check
          _
        $region98: #{tpu_custom_call.1} parent=11 // pred_check_branch
          %450 = sbr.rel target = $region100
        $region99: #{tpu_custom_call.1} parent=11 // pred_region
          %451 = sst [smem:[#allocation17]] [#allocation60]
          %452 = sst [smem:[#allocation18]] [#allocation59]
        $region100: #{tpu_custom_call.1} parent=11 // pred_fallthru
          _
        %454 = shalt.err (0)
        %s456 = sshll.u32 %s448, 4
        %s457 = int_to_ptr.vmem [resolvable:$true] %s456
        %459 = dma.hbm_to_vmem [thread:$0]  %s447, 16, %s457, [#allocation5]
        %s460 = smul.addr %s444, 16
        %s461 = scalar_lea.hbm %s4, %s460
        %s462 = scalar_lea.vmem [#allocation3], 7
        // Predicated region
        $region101: #{tpu_custom_call.1} parent=11 // pred_check
          _
        $region102: #{tpu_custom_call.1} parent=11 // pred_check_branch
          %464 = sbr.rel target = $region104
        $region103: #{tpu_custom_call.1} parent=11 // pred_region
          %465 = sst [smem:[#allocation17]] [#allocation62]
          %466 = sst [smem:[#allocation18]] [#allocation61]
        $region104: #{tpu_custom_call.1} parent=11 // pred_fallthru
          _
        %468 = shalt.err (0)
        %s470 = sshll.u32 %s462, 4
        %s471 = int_to_ptr.vmem [resolvable:$true] %s470
        %473 = dma.hbm_to_vmem [thread:$0]  %s461, 16, %s471, %s140
        %s474 = smul.addr %s445, 16
        %s475 = scalar_lea.hbm %s3, %s474
        %s476 = scalar_lea.vmem [#allocation4], 7
        // Predicated region
        $region105: #{tpu_custom_call.1} parent=11 // pred_check
          _
        $region106: #{tpu_custom_call.1} parent=11 // pred_check_branch
          %478 = sbr.rel target = $region108
        $region107: #{tpu_custom_call.1} parent=11 // pred_region
          %479 = sst [smem:[#allocation17]] [#allocation64]
          %480 = sst [smem:[#allocation18]] [#allocation63]
        $region108: #{tpu_custom_call.1} parent=11 // pred_fallthru
          _
        %482 = shalt.err (0)
        %s484 = sshll.u32 %s476, 4
        %s485 = int_to_ptr.vmem [resolvable:$true] %s484
        %487 = dma.hbm_to_vmem [thread:$0]  %s475, 16, %s485, %s154
        %s488 = smul.u32 1, 1
        %s489 = sshll.u32 %s488, 4
        %490 = dma.done [#allocation5], %s489
        %s491 = sshll.u32 %s488, 4
        %492 = dma.done %s140, %s491
        %s493 = sshll.u32 %s488, 4
        %494 = dma.done %s154, %s493
        %s495 = sshll.u32 %s488, 4
        %496 = dma.done [#allocation5], %s495
        %s497 = sshll.u32 %s488, 4
        %498 = dma.done %s140, %s497
        %s499 = sshll.u32 %s488, 4
        %500 = dma.done %s154, %s499
        %s501 = sshll.u32 %s488, 4
        %502 = dma.done [#allocation5], %s501
        %s503 = sshll.u32 %s488, 4
        %504 = dma.done %s140, %s503
        %s505 = sshll.u32 %s488, 4
        %506 = dma.done %s154, %s505
        %s507 = sshll.u32 %s488, 4
        %508 = dma.done [#allocation5], %s507
        %s509 = sshll.u32 %s488, 4
        %510 = dma.done %s140, %s509
        %s511 = sshll.u32 %s488, 4
        %512 = dma.done %s154, %s511
        %s513 = sshll.u32 %s488, 4
        %514 = dma.done [#allocation5], %s513
        %s515 = sshll.u32 %s488, 4
        %516 = dma.done %s140, %s515
        %s517 = sshll.u32 %s488, 4
        %518 = dma.done %s154, %s517
        %s519 = sshll.u32 %s488, 4
        %520 = dma.done [#allocation5], %s519
        %s521 = sshll.u32 %s488, 4
        %522 = dma.done %s140, %s521
        %s523 = sshll.u32 %s488, 4
        %524 = dma.done %s154, %s523
        %s525 = sshll.u32 %s488, 4
        %526 = dma.done [#allocation5], %s525
        %s527 = sshll.u32 %s488, 4
        %528 = dma.done %s140, %s527
        %s529 = sshll.u32 %s488, 4
        %530 = dma.done %s154, %s529
        %s531 = sshll.u32 %s488, 4
        %532 = dma.done [#allocation5], %s531
        %s533 = sshll.u32 %s488, 4
        %534 = dma.done %s140, %s533
        %s535 = sshll.u32 %s488, 4
        %536 = dma.done %s154, %s535
        %v537 = vld [vmem:[#allocation2] sm:$0xff]
        %538 = vst [vmem:[%s106] sm:$0xff] %v537
        %v539 = vld [vmem:[#allocation3] sm:$0xff]
        %540 = vst [vmem:[%s113] sm:$0xff] %v539
        %v541 = vld [vmem:[#allocation4] sm:$0xff]
        %542 = vst [vmem:[%s120] sm:$0xff] %v541
        %s543 = sand.u32 %s41, 1
        %s544 = scalar_lea.sflag [#allocation11], %s543
        %s545 = sand.u32 %s41, 1
        %s546 = smul.addr %s545, 8
        %s547 = scalar_lea.vmem [#allocation10], %s546
        %s548 = sand.u32 %s32, 1
        %s549 = scalar_lea.sflag [#allocation13], %s548
        %s550 = sand.u32 %s60, 1
        %s551 = smul.addr %s550, 8
        %s552 = scalar_lea.vmem [#allocation12], %s551
        %s553 = sand.u32 %s32, 1
        %s554 = scalar_lea.sflag [#allocation13], %s553
        %s555 = sand.u32 %s79, 1
        %s556 = smul.addr %s555, 8
        %s557 = scalar_lea.vmem [#allocation14], %s556
        // Predicated region
        $region109: #{tpu_custom_call.1} parent=11 // pred_check
          %p558 = pneg %p47
        $region110: #{tpu_custom_call.1} parent=11 // pred_check_branch
          %560 = sbr.rel (%p558) target = $region112
        $region111: #{tpu_custom_call.1} parent=11 // pred_region
          %s562 = ssub.s32 128, 128
          %563 = vsyncadd %s544, %s562
          %s564 = smul.addr %s32, 128
          %s565 = scalar_lea.hbm %s5, %s564
          %s567 = sshll.u32 %s547, 4
          %s568 = int_to_ptr.vmem [resolvable:$true] %s567
          %570 = dma.vmem_to_hbm [thread:$0]  %s568, 128, %s565, %s544
        $region112: #{tpu_custom_call.1} parent=11 // pred_fallthru
          _
        // Predicated region
        $region113: #{tpu_custom_call.1} parent=11 // pred_check
          %p571 = pneg %p66
        $region114: #{tpu_custom_call.1} parent=11 // pred_check_branch
          %573 = sbr.rel (%p571) target = $region116
        $region115: #{tpu_custom_call.1} parent=11 // pred_region
          %s575 = ssub.s32 128, 128
          %576 = vsyncadd %s549, %s575
          %s577 = smul.addr %s32, 128
          %s578 = scalar_lea.hbm %s6, %s577
          %s580 = sshll.u32 %s552, 4
          %s581 = int_to_ptr.vmem [resolvable:$true] %s580
          %583 = dma.vmem_to_hbm [thread:$0]  %s581, 128, %s578, %s549
        $region116: #{tpu_custom_call.1} parent=11 // pred_fallthru
          _
        // Predicated region
        $region117: #{tpu_custom_call.1} parent=11 // pred_check
          %p584 = pneg %p85
        $region118: #{tpu_custom_call.1} parent=11 // pred_check_branch
          %586 = sbr.rel (%p584) target = $region120
        $region119: #{tpu_custom_call.1} parent=11 // pred_region
          %s588 = ssub.s32 128, 128
          %589 = vsyncadd %s554, %s588
          %s590 = smul.addr %s32, 128
          %s591 = scalar_lea.hbm %s7, %s590
          %s593 = sshll.u32 %s557, 4
          %s594 = int_to_ptr.vmem [resolvable:$true] %s593
          %596 = dma.vmem_to_hbm [thread:$0]  %s594, 128, %s591, %s554
        $region120: #{tpu_custom_call.1} parent=11 // pred_fallthru
          _
      $region12: #{tpu_custom_call.1} parent=5 // pred_fallthru
        _
      %p597 = scmp.le.s32.totalorder 1, %s32
      // Predicated region
      $region121: #{tpu_custom_call.1} parent=5 // pred_check
        %p598 = pneg %p597
      $region122: #{tpu_custom_call.1} parent=5 // pred_check_branch
        %600 = sbr.rel (%p598) target = $region124
      $region123: #{tpu_custom_call.1} parent=5 // pred_region
        %s601 = ssub.s32 %s32, 1
        // Predicated region
        $region125: #{tpu_custom_call.1} parent=123 // pred_check
          %p602 = pneg %p53
        $region126: #{tpu_custom_call.1} parent=123 // pred_check_branch
          %604 = sbr.rel (%p602) target = $region128
        $region127: #{tpu_custom_call.1} parent=123 // pred_region
          %s605 = sand.u32 %s44, 1
          %s606 = scalar_lea.sflag [#allocation11], %s605
          %s607 = sand.u32 %s44, 1
          %s608 = smul.addr %s607, 8
          %s609 = scalar_lea.vmem [#allocation10], %s608
          %610 = dma.done %s606, 128
        $region128: #{tpu_custom_call.1} parent=123 // pred_fallthru
          _
        // Predicated region
        $region129: #{tpu_custom_call.1} parent=123 // pred_check
          %p611 = pneg %p72
        $region130: #{tpu_custom_call.1} parent=123 // pred_check_branch
          %613 = sbr.rel (%p611) target = $region132
        $region131: #{tpu_custom_call.1} parent=123 // pred_region
          %s614 = sand.u32 %s37, 1
          %s615 = scalar_lea.sflag [#allocation13], %s614
          %s616 = sand.u32 %s63, 1
          %s617 = smul.addr %s616, 8
          %s618 = scalar_lea.vmem [#allocation12], %s617
          %619 = dma.done %s615, 128
        $region132: #{tpu_custom_call.1} parent=123 // pred_fallthru
          _
        // Predicated region
        $region133: #{tpu_custom_call.1} parent=123 // pred_check
          %p620 = pneg %p91
        $region134: #{tpu_custom_call.1} parent=123 // pred_check_branch
          %622 = sbr.rel (%p620) target = $region136
        $region135: #{tpu_custom_call.1} parent=123 // pred_region
          %s623 = sand.u32 %s37, 1
          %s624 = scalar_lea.sflag [#allocation13], %s623
          %s625 = sand.u32 %s82, 1
          %s626 = smul.addr %s625, 8
          %s627 = scalar_lea.vmem [#allocation14], %s626
          %628 = dma.done %s624, 128
        $region136: #{tpu_custom_call.1} parent=123 // pred_fallthru
          _
      $region124: #{tpu_custom_call.1} parent=5 // pred_fallthru
        _
    $region6: #{tpu_custom_call.1} parent=1 // loop_footer
      %s36 = sadd.s32 1, %s32
    $region7: #{tpu_custom_call.1} parent=1 // loop_footer_branch
      %31 = sbr.rel target = $region3
    $region8: #{tpu_custom_call.1} parent=1 // loop_exit
      _
    %629 = vsyncpa [#allocation11], 1
    %s630 = scalar_lea.sflag [#allocation11], 1
    %631 = vsyncpa %s630, 1
    %632 = vsyncpa [#allocation13], 1
    %s633 = scalar_lea.sflag [#allocation13], 1
    %634 = vsyncpa %s633, 1
  %635 = vsyncmov [#allocation5]
  %s636 = vpop.sfrf %635
  %p637 = scmp.eq.s32.totalorder %s636, 0
  %p638 = pneg %p637
  %640 = shalt.err (%p638)
  %s641 = scalar_lea.sflag [#allocation5], 1
  %642 = vsyncmov %s641
  %s643 = vpop.sfrf %642
  %p644 = scmp.eq.s32.totalorder %s643, 0
  %p645 = pneg %p644
  %647 = shalt.err (%p645)
  %s648 = scalar_lea.sflag [#allocation5], 2
  %649 = vsyncmov %s648
  %s650 = vpop.sfrf %649
  %p651 = scmp.eq.s32.totalorder %s650, 0
  %p652 = pneg %p651
  %654 = shalt.err (%p652)

</llo_original>
